<compile_context>
chip_gen: v6e
topology: v6e:2x2x1
jax: 0.10.0
libtpu: 0.0.40
codegen_flags: <defaults>
</compile_context>

<pallas_src>
import numpy as np
import jax
import jax.numpy as jnp
from jax.experimental import pallas as pl
from jax.experimental.pallas import tpu as pltpu

LANE = 128     # feature dims are zero-padded to multiples of this (lane width)
SUBLANE = 8    # node dim is padded to a multiple of this (sublane width)


def _round_up(v, m):
    return ((v + m - 1) // m) * m


def _pad2(a, rows, cols):
    r, c = a.shape
    return jnp.pad(a, ((0, rows - r), (0, cols - c)))


# ----------------------------- fused forward kernel --------------------------
def _make_fused_kernel(num_conv, bn_d_real, mm_dtype):
    """num_conv GraphConv layers fused with their ReLU+BN epilogues + pred head.

    bn_d_real[l]: real (unpadded) output width of layer l if it is followed by
    ReLU+BatchNorm, else None (the last layer).
    mm_dtype: optional narrower operand dtype for matmuls (accumulation f32).
    """

    def kernel(*refs):
        adj_ref, x_ref = refs[0], refs[1]
        idx = 2
        conv_w, conv_b = [], []
        for _ in range(num_conv):
            conv_w.append(refs[idx])
            conv_b.append(refs[idx + 1])
            idx += 2
        pw_refs = [refs[idx + i] for i in range(num_conv)]
        idx += num_conv
        pb_ref = refs[idx]
        out_ref = refs[idx + 1]

        B, Np, _ = adj_ref.shape
        M = B * Np
        lpad = out_ref.shape[-1]

        cast = (lambda a: a.astype(mm_dtype)) if mm_dtype is not None else (lambda a: a)

        adj = adj_ref[...]          # (B, Np, Np), reused by every layer

        # Concat-free pred head: accumulate directly into the VMEM-resident
        # output block (grid-less call => this block *is* the VMEM buffer, so
        # there is no vreg-carried accumulator and only one HBM writeback).
        out_ref[...] = jnp.broadcast_to(pb_ref[...], (M, lpad))

        def graph_conv(h2, w_ref, b_ref, d_real):
            din = h2.shape[-1]
            dout = w_ref.shape[1]
            w = w_ref[...]
            if din > dout:
                # Feature transform first: the adj contraction then runs over
                # the smaller output width (identical math, fewer MXU passes,
                # smaller (B,Np,dout) intermediate).
                xw = jnp.dot(cast(h2), w, preferred_element_type=jnp.float32)
                y = jnp.einsum("bij,bjd->bid", adj,
                               cast(xw).reshape(B, Np, dout),
                               preferred_element_type=jnp.float32).reshape(M, dout)
            else:
                agg = jnp.einsum("bij,bjd->bid", adj,
                                 cast(h2).reshape(B, Np, din),
                                 preferred_element_type=jnp.float32)
                y = jnp.dot(cast(agg.reshape(M, din)), w,
                            preferred_element_type=jnp.float32)
            y = y + b_ref[...]
            # F.normalize(y, p=2, dim=2) == y * 1/max(||y||, 1e-12); zero-padded
            # lanes contribute nothing to the norm.
            ss = jnp.sum(y * y, axis=-1, keepdims=True)
            y = y * jax.lax.rsqrt(jnp.maximum(ss, 1e-24))
            if d_real is None:                       # last layer: no ReLU / BN
                return y
            y = jnp.maximum(y, 0.0)                  # nn.ReLU
            # Single-pass training-mode BatchNorm1d(num_nodes): per-node-channel
            # stats over (batch, real features), biased var, eps=1e-5, gamma=1,
            # beta=0.  Sum / sum-of-squares form: zero-padded lanes drop out of
            # both sums; the count uses the real feature width.
            y3 = y.reshape(B, Np, dout)
            inv_cnt = 1.0 / float(B * d_real)
            s = jnp.sum(jnp.sum(y3, axis=2, keepdims=True), axis=0, keepdims=True)
            q = jnp.sum(jnp.sum(y3 * y3, axis=2, keepdims=True), axis=0, keepdims=True)
            mean = s * inv_cnt
            var = jnp.maximum(q * inv_cnt - mean * mean, 0.0)
            yn = (y3 - mean) * jax.lax.rsqrt(var + 1e-5)
            # Padded lanes come out as (0-mean)*rsqrt != 0 here, but every
            # downstream consumer (next-layer W rows, pred-slice rows) is zero
            # on those lanes, so nothing leaks into real outputs.
            return yn.reshape(M, dout)

        h = x_ref[...].reshape(M, x_ref.shape[-1])
        for l in range(num_conv):
            h = graph_conv(h, conv_w[l], conv_b[l], bn_d_real[l])
            out_ref[...] += jnp.dot(cast(h), pw_refs[l][...],
                                    preferred_element_type=jnp.float32)

    return kernel


# ------------------------------ full forward ---------------------------------
def gcn_encoder_node_forward(x, adj, params, *, matmul_dtype=None):
    """Forward of GcnEncoderNode.  Returns (pred, adj_att).

    matmul_dtype: optional narrower matmul-operand dtype (e.g. jnp.bfloat16 on
    v6e/v7x for ~2x MXU throughput; accumulation stays f32).  Default None
    keeps f32 operands to match PyTorch numerics.
    """
    adj_in = adj
    B, N, Din = x.shape
    H = params["conv_first_w"].shape[1]
    E = params["conv_last_w"].shape[1]
    num_block = len(params["conv_block_w"])
    num_conv = num_block + 2               # == num_layers

    Hp = _round_up(H, LANE)
    Ep = _round_up(E, LANE)
    Np = _round_up(N, SUBLANE)

    # Pad nodes to a sublane multiple (padded adj rows/cols and x rows are zero;
    # BN stats are per node, so padded node channels never mix with real ones).
    if Np != N:
        adj = jnp.pad(adj, ((0, 0), (0, Np - N), (0, Np - N)))
        x = jnp.pad(x, ((0, 0), (0, Np - N), (0, 0)))

    def mm(a):
        return a.astype(matmul_dtype) if matmul_dtype is not None else a

    # Zero-pad weights/biases to lane-dense widths (the MXU pads internally
    # anyway; this makes every VPU/XLU epilogue and store lane-dense).
    conv_ws = [_pad2(params["conv_first_w"], Din, Hp)]
    conv_bs = [jnp.pad(params["conv_first_b"], (0, Hp - H)).reshape(1, Hp)]
    for w, b in zip(params["conv_block_w"], params["conv_block_b"]):
        conv_ws.append(_pad2(w, Hp, Hp))
        conv_bs.append(jnp.pad(b, (0, Hp - H)).reshape(1, Hp))
    conv_ws.append(_pad2(params["conv_last_w"], Hp, Ep))
    conv_bs.append(jnp.pad(params["conv_last_b"], (0, Ep - E)).reshape(1, Ep))

    pw = params["pred_w_t"]                 # (hidden*(L-1)+emb, label_dim)
    L = pw.shape[1]
    layer_real = [H] * (num_conv - 1) + [E]
    layer_pad = [Hp] * (num_conv - 1) + [Ep]
    assert pw.shape[0] == sum(layer_real)
    pw_slices, off = [], 0
    for dr, dp in zip(layer_real, layer_pad):
        pw_slices.append(jnp.pad(pw[off:off + dr], ((0, dp - dr), (0, LANE - L))))
        off += dr
    pb_pad = jnp.pad(params["pred_b"], (0, LANE - L)).reshape(1, LANE)

    inputs = [mm(adj), mm(x)]
    for w, b in zip(conv_ws, conv_bs):
        inputs += [mm(w), b]
    inputs += [mm(s) for s in pw_slices] + [pb_pad]

    bn_d_real = tuple([H] * (num_conv - 1) + [None])
    kernel = _make_fused_kernel(num_conv, bn_d_real, matmul_dtype)

    # Explicit scoped-VMEM budget: everything-resident inputs + output + a few
    # activation temporaries, with headroom (raises v5e's 16 MiB default).
    in_bytes = sum(int(a.size) * a.dtype.itemsize for a in inputs)
    act_bytes = 6 * B * Np * max(Hp, Ep, LANE) * 4
    out_bytes = B * Np * LANE * 4
    vmem_limit = int(min(max(2 * (in_bytes + out_bytes + act_bytes), 32 << 20), 56 << 20))

    # Grid-less call: whole arrays live in VMEM for the single invocation, so
    # no pipeline double-buffering is allocated at all.
    # TODO(synk): at production graph sizes (adj ~ B*N^2*4B exceeds VMEM) move
    # adj to memory_space=pl.ANY and stream output-node row-blocks via
    # pltpu.emit_pipeline, and add a node-parallel grid axis (with a per-layer h
    # exchange) to use v7x's second TensorCore.
    vmem = pltpu.MemorySpace.VMEM
    out2d = pl.pallas_call(
        kernel,
        out_shape=jax.ShapeDtypeStruct((B * Np, LANE), jnp.float32),
        in_specs=[pl.BlockSpec(memory_space=vmem) for _ in inputs],
        out_specs=pl.BlockSpec(memory_space=vmem),
        compiler_params=pltpu.CompilerParams(vmem_limit_bytes=vmem_limit),
    )(*inputs)

    # TODO(synk): for large B*N the 128-lane-padded f32 writeback is oversized;
    # measure a masked (B,N,label_dim) store or emit a bf16 slab at scale.
    pred = out2d.reshape(B, Np, LANE)[:, :N, :L]
    # att=False -> adj_att is adj replicated num_layers times; lazy broadcast.
    adj_att = jnp.broadcast_to(adj_in[..., None], (B, N, N, num_conv))
    return pred, adj_att


# ------------------------- pure-JAX reference (validation) -------------------
def _reference_forward(x, adj, params):
    hi = jax.lax.Precision.HIGHEST

    def conv(h, w, b):
        y = jnp.einsum("bij,bjd->bid", adj, h, precision=hi)
        y = jnp.einsum("bnd,de->bne", y, w, precision=hi) + b
        n = jnp.sqrt(jnp.sum(y * y, axis=2, keepdims=True))
        return y / jnp.maximum(n, 1e-12)

    def bn(h):
        mean = jnp.mean(h, axis=(0, 2), keepdims=True)
        var = jnp.mean(jnp.square(h - mean), axis=(0, 2), keepdims=True)
        return (h - mean) / jnp.sqrt(var + 1e-5)

    h = bn(jnp.maximum(conv(x, params["conv_first_w"], params["conv_first_b"]), 0.0))
    hs = [h]
    for w, b in zip(params["conv_block_w"], params["conv_block_b"]):
        h = bn(jnp.maximum(conv(h, w, b), 0.0))
        hs.append(h)
    hs.append(conv(h, params["conv_last_w"], params["conv_last_b"]))
    emb = jnp.concatenate(hs, axis=2)
    return jnp.einsum("bnp,pl->bnl", emb, params["pred_w_t"],
                      precision=hi) + params["pred_b"]


# ---------------------------------- main --------------------------------------
if __name__ == "__main__":
    B, N = 2, 16
    input_dim, hidden_dim, embedding_dim, label_dim = 8, 32, 32, 4
    num_layers = 3                                   # 1 first + 1 block + 1 last

    key = jax.random.PRNGKey(0)
    keys = jax.random.split(key, 8)

    # Xavier-uniform with gain = calculate_gain('relu') = sqrt(2); conv biases 0.
    gain = float(np.sqrt(2.0))

    def xavier(k, fan_in, fan_out):
        bound = gain * np.sqrt(6.0 / (fan_in + fan_out))
        return jax.random.uniform(k, (fan_in, fan_out), jnp.float32, -bound, bound)

    params = {
        "conv_first_w": xavier(keys[0], input_dim, hidden_dim),
        "conv_first_b": jnp.zeros((hidden_dim,), jnp.float32),
        "conv_block_w": [xavier(keys[1], hidden_dim, hidden_dim)],
        "conv_block_b": [jnp.zeros((hidden_dim,), jnp.float32)],
        "conv_last_w": xavier(keys[2], hidden_dim, embedding_dim),
        "conv_last_b": jnp.zeros((embedding_dim,), jnp.float32),
    }
    pred_input_dim = hidden_dim * (num_layers - 1) + embedding_dim   # concat=True
    lin_bound = 1.0 / np.sqrt(pred_input_dim)
    # pred Linear weight stored pre-transposed as (P, label_dim) — glue transpose.
    params["pred_w_t"] = jax.random.uniform(
        keys[3], (pred_input_dim, label_dim), jnp.float32, -lin_bound, lin_bound)
    params["pred_b"] = jax.random.uniform(
        keys[4], (label_dim,), jnp.float32, -lin_bound, lin_bound)

    x = jax.random.normal(keys[5], (B, N, input_dim), jnp.float32)
    adj_raw = jax.random.uniform(keys[6], (B, N, N), jnp.float32)
    adj = 0.5 * (adj_raw + jnp.swapaxes(adj_raw, 1, 2))   # symmetric "adjacency"

    pred, adj_att = jax.jit(gcn_encoder_node_forward)(x, adj, params)
    jax.block_until_ready((pred, adj_att))

    assert pred.shape == (B, N, label_dim)
    assert adj_att.shape == (B, N, N, num_layers)
    assert pred.dtype == jnp.float32 and adj_att.dtype == jnp.float32

    # Loose tolerance: allows for MXU f32 pass-count / rsqrt-vs-div differences
    # while still catching structural errors.
    pred_ref = _reference_forward(x, adj, params)
    err = float(jnp.max(jnp.abs(pred - pred_ref)))
    assert err < 5e-2, f"kernel vs reference mismatch: {err}"

    # TODO(synk): construct_mask / batch_num_nodes masking, CrossEntropyLoss and
    # the att=True path are not part of this forward (defaults used here).
    print("KERNEL_OK")
</pallas_src>

<mosaic_0001>
module attributes {stable_mosaic.version = 11 : i64} {
  func.func @kernel(%arg0: memref<2x16x16xf32, #tpu.memory_space<vmem>>, %arg1: memref<2x16x8xf32, #tpu.memory_space<vmem>>, %arg2: memref<8x128xf32, #tpu.memory_space<vmem>>, %arg3: memref<1x128xf32, #tpu.memory_space<vmem>>, %arg4: memref<128x128xf32, #tpu.memory_space<vmem>>, %arg5: memref<1x128xf32, #tpu.memory_space<vmem>>, %arg6: memref<128x128xf32, #tpu.memory_space<vmem>>, %arg7: memref<1x128xf32, #tpu.memory_space<vmem>>, %arg8: memref<128x128xf32, #tpu.memory_space<vmem>>, %arg9: memref<128x128xf32, #tpu.memory_space<vmem>>, %arg10: memref<128x128xf32, #tpu.memory_space<vmem>>, %arg11: memref<1x128xf32, #tpu.memory_space<vmem>>, %arg12: memref<32x128xf32, #tpu.memory_space<vmem>>) attributes {dimension_semantics = [], scalar_prefetch = 0 : i64, scratch_operands = 0 : i64, tpu.core_type = #tpu.core_type<tc>} {
    %c0 = arith.constant 0 : index
    %c0_0 = arith.constant 0 : index
    %c0_1 = arith.constant 0 : index
    %0 = vector.load %arg0[%c0, %c0_0, %c0_1] : memref<2x16x16xf32, #tpu.memory_space<vmem>>, vector<2x16x16xf32>
    %c0_2 = arith.constant 0 : index
    %c0_3 = arith.constant 0 : index
    %1 = vector.load %arg11[%c0_2, %c0_3] : memref<1x128xf32, #tpu.memory_space<vmem>>, vector<1x128xf32>
    %2 = vector.shape_cast %1 : vector<1x128xf32> to vector<1x128xf32>
    %3 = vector.broadcast %2 : vector<1x128xf32> to vector<32x128xf32>
    %c0_4 = arith.constant 0 : index
    %c0_5 = arith.constant 0 : index
    %4 = vector.load %arg12[%c0_4, %c0_5] : memref<32x128xf32, #tpu.memory_space<vmem>>, vector<32x128xf32>
    tpu.vector_store %arg12[%c0_4, %c0_5], %3 {strides = array<i32>} : memref<32x128xf32, #tpu.memory_space<vmem>>, vector<32x128xf32>,
    %c0_6 = arith.constant 0 : index
    %c0_7 = arith.constant 0 : index
    %c0_8 = arith.constant 0 : index
    %5 = vector.load %arg1[%c0_6, %c0_7, %c0_8] : memref<2x16x8xf32, #tpu.memory_space<vmem>>, vector<2x16x8xf32>
    %6 = vector.shape_cast %5 : vector<2x16x8xf32> to vector<32x8xf32>
    %c0_9 = arith.constant 0 : index
    %c0_10 = arith.constant 0 : index
    %7 = vector.load %arg2[%c0_9, %c0_10] : memref<8x128xf32, #tpu.memory_space<vmem>>, vector<8x128xf32>
    %8 = vector.shape_cast %6 : vector<32x8xf32> to vector<2x16x8xf32>
    "tpu.trace_start"() <{level = 10 : i32, message = "bij,bjd->bid"}> : () -> ()
    %cst = arith.constant dense<0.000000e+00> : vector<2x16x8xf32>
    %9 = tpu.matmul %0, %8, %cst {dimension_numbers = #tpu.dot_dimension_numbers<[2], [1], [1], [2], [0, 0, 0, 1, 1, 2], [0], [0]>} : vector<2x16x16xf32>, vector<2x16x8xf32>, vector<2x16x8xf32> -> vector<2x16x8xf32>
    "tpu.trace_stop"() : () -> ()
    %10 = vector.shape_cast %9 : vector<2x16x8xf32> to vector<32x8xf32>
    %cst_11 = arith.constant dense<0.000000e+00> : vector<32x128xf32>
    %11 = tpu.matmul %10, %7, %cst_11 {dimension_numbers = #tpu.dot_dimension_numbers<[1], [0], [0], [1], [0, 0, 1, 1], [], []>} : vector<32x8xf32>, vector<8x128xf32>, vector<32x128xf32> -> vector<32x128xf32>
    %c0_12 = arith.constant 0 : index
    %c0_13 = arith.constant 0 : index
    %12 = vector.load %arg3[%c0_12, %c0_13] : memref<1x128xf32, #tpu.memory_space<vmem>>, vector<1x128xf32>
    %13 = vector.broadcast %12 : vector<1x128xf32> to vector<32x128xf32>
    %14 = arith.addf %11, %13 : vector<32x128xf32>
    %15 = arith.mulf %14, %14 : vector<32x128xf32>
    %cst_14 = arith.constant dense<0.000000e+00> : vector<32xf32>
    %16 = vector.multi_reduction <add>, %15, %cst_14 [1] : vector<32x128xf32> to vector<32xf32>
    %17 = vector.shape_cast %16 : vector<32xf32> to vector<32x1xf32>
    %cst_15 = arith.constant 1.000000e-24 : f32
    %18 = vector.broadcast %cst_15 : f32 to vector<32x1xf32>
    %19 = arith.maximumf %17, %18 : vector<32x1xf32>
    %20 = math.rsqrt %19 : vector<32x1xf32>
    %21 = vector.broadcast %20 : vector<32x1xf32> to vector<32x128xf32>
    %22 = arith.mulf %14, %21 : vector<32x128xf32>
    %cst_16 = arith.constant 0.000000e+00 : f32
    %23 = vector.broadcast %cst_16 : f32 to vector<32x128xf32>
    %24 = arith.maximumf %22, %23 : vector<32x128xf32>
    %25 = vector.shape_cast %24 : vector<32x128xf32> to vector<2x16x128xf32>
    %cst_17 = arith.constant dense<0.000000e+00> : vector<2x16xf32>
    %26 = vector.multi_reduction <add>, %25, %cst_17 [2] : vector<2x16x128xf32> to vector<2x16xf32>
    %27 = vector.shape_cast %26 : vector<2x16xf32> to vector<2x16x1xf32>
    %cst_18 = arith.constant dense<0.000000e+00> : vector<16x1xf32>
    %28 = vector.multi_reduction <add>, %27, %cst_18 [0] : vector<2x16x1xf32> to vector<16x1xf32>
    %29 = vector.shape_cast %28 : vector<16x1xf32> to vector<1x16x1xf32>
    %30 = arith.mulf %25, %25 : vector<2x16x128xf32>
    %cst_19 = arith.constant dense<0.000000e+00> : vector<2x16xf32>
    %31 = vector.multi_reduction <add>, %30, %cst_19 [2] : vector<2x16x128xf32> to vector<2x16xf32>
    %32 = vector.shape_cast %31 : vector<2x16xf32> to vector<2x16x1xf32>
    %cst_20 = arith.constant dense<0.000000e+00> : vector<16x1xf32>
    %33 = vector.multi_reduction <add>, %32, %cst_20 [0] : vector<2x16x1xf32> to vector<16x1xf32>
    %34 = vector.shape_cast %33 : vector<16x1xf32> to vector<1x16x1xf32>
    %cst_21 = arith.constant 1.562500e-02 : f32
    %35 = vector.broadcast %cst_21 : f32 to vector<1x16x1xf32>
    %36 = arith.mulf %29, %35 : vector<1x16x1xf32>
    %cst_22 = arith.constant 1.562500e-02 : f32
    %37 = vector.broadcast %cst_22 : f32 to vector<1x16x1xf32>
    %38 = arith.mulf %34, %37 : vector<1x16x1xf32>
    %39 = arith.mulf %36, %36 : vector<1x16x1xf32>
    %40 = arith.subf %38, %39 : vector<1x16x1xf32>
    %cst_23 = arith.constant 0.000000e+00 : f32
    %41 = vector.broadcast %cst_23 : f32 to vector<1x16x1xf32>
    %42 = arith.maximumf %40, %41 : vector<1x16x1xf32>
    %43 = vector.broadcast %36 : vector<1x16x1xf32> to vector<2x16x128xf32>
    %44 = arith.subf %25, %43 : vector<2x16x128xf32>
    %cst_24 = arith.constant 9.99999974E-6 : f32
    %45 = vector.broadcast %cst_24 : f32 to vector<1x16x1xf32>
    %46 = arith.addf %42, %45 : vector<1x16x1xf32>
    %47 = math.rsqrt %46 : vector<1x16x1xf32>
    %48 = vector.broadcast %47 : vector<1x16x1xf32> to vector<2x16x128xf32>
    %49 = arith.mulf %44, %48 : vector<2x16x128xf32>
    %50 = vector.shape_cast %49 : vector<2x16x128xf32> to vector<32x128xf32>
    %c0_25 = arith.constant 0 : index
    %c0_26 = arith.constant 0 : index
    %51 = vector.load %arg12[%c0_25, %c0_26] : memref<32x128xf32, #tpu.memory_space<vmem>>, vector<32x128xf32>
    %c0_27 = arith.constant 0 : index
    %c0_28 = arith.constant 0 : index
    %52 = vector.load %arg8[%c0_27, %c0_28] : memref<128x128xf32, #tpu.memory_space<vmem>>, vector<128x128xf32>
    %cst_29 = arith.constant dense<0.000000e+00> : vector<32x128xf32>
    %53 = tpu.matmul %50, %52, %cst_29 {dimension_numbers = #tpu.dot_dimension_numbers<[1], [0], [0], [1], [0, 0, 1, 1], [], []>} : vector<32x128xf32>, vector<128x128xf32>, vector<32x128xf32> -> vector<32x128xf32>
    %54 = arith.addf %51, %53 : vector<32x128xf32>
    %c0_30 = arith.constant 0 : index
    %c0_31 = arith.constant 0 : index
    %55 = vector.load %arg12[%c0_30, %c0_31] : memref<32x128xf32, #tpu.memory_space<vmem>>, vector<32x128xf32>
    tpu.vector_store %arg12[%c0_30, %c0_31], %54 {strides = array<i32>} : memref<32x128xf32, #tpu.memory_space<vmem>>, vector<32x128xf32>,
    %c0_32 = arith.constant 0 : index
    %c0_33 = arith.constant 0 : index
    %56 = vector.load %arg4[%c0_32, %c0_33] : memref<128x128xf32, #tpu.memory_space<vmem>>, vector<128x128xf32>
    %57 = vector.shape_cast %50 : vector<32x128xf32> to vector<2x16x128xf32>
    "tpu.trace_start"() <{level = 10 : i32, message = "bij,bjd->bid"}> : () -> ()
    %cst_34 = arith.constant dense<0.000000e+00> : vector<2x16x128xf32>
    %58 = tpu.matmul %0, %57, %cst_34 {dimension_numbers = #tpu.dot_dimension_numbers<[2], [1], [1], [2], [0, 0, 0, 1, 1, 2], [0], [0]>} : vector<2x16x16xf32>, vector<2x16x128xf32>, vector<2x16x128xf32> -> vector<2x16x128xf32>
    "tpu.trace_stop"() : () -> ()
    %59 = vector.shape_cast %58 : vector<2x16x128xf32> to vector<32x128xf32>
    %cst_35 = arith.constant dense<0.000000e+00> : vector<32x128xf32>
    %60 = tpu.matmul %59, %56, %cst_35 {dimension_numbers = #tpu.dot_dimension_numbers<[1], [0], [0], [1], [0, 0, 1, 1], [], []>} : vector<32x128xf32>, vector<128x128xf32>, vector<32x128xf32> -> vector<32x128xf32>
    %c0_36 = arith.constant 0 : index
    %c0_37 = arith.constant 0 : index
    %61 = vector.load %arg5[%c0_36, %c0_37] : memref<1x128xf32, #tpu.memory_space<vmem>>, vector<1x128xf32>
    %62 = vector.broadcast %61 : vector<1x128xf32> to vector<32x128xf32>
    %63 = arith.addf %60, %62 : vector<32x128xf32>
    %64 = arith.mulf %63, %63 : vector<32x128xf32>
    %cst_38 = arith.constant dense<0.000000e+00> : vector<32xf32>
    %65 = vector.multi_reduction <add>, %64, %cst_38 [1] : vector<32x128xf32> to vector<32xf32>
    %66 = vector.shape_cast %65 : vector<32xf32> to vector<32x1xf32>
    %cst_39 = arith.constant 1.000000e-24 : f32
    %67 = vector.broadcast %cst_39 : f32 to vector<32x1xf32>
    %68 = arith.maximumf %66, %67 : vector<32x1xf32>
    %69 = math.rsqrt %68 : vector<32x1xf32>
    %70 = vector.broadcast %69 : vector<32x1xf32> to vector<32x128xf32>
    %71 = arith.mulf %63, %70 : vector<32x128xf32>
    %cst_40 = arith.constant 0.000000e+00 : f32
    %72 = vector.broadcast %cst_40 : f32 to vector<32x128xf32>
    %73 = arith.maximumf %71, %72 : vector<32x128xf32>
    %74 = vector.shape_cast %73 : vector<32x128xf32> to vector<2x16x128xf32>
    %cst_41 = arith.constant dense<0.000000e+00> : vector<2x16xf32>
    %75 = vector.multi_reduction <add>, %74, %cst_41 [2] : vector<2x16x128xf32> to vector<2x16xf32>
    %76 = vector.shape_cast %75 : vector<2x16xf32> to vector<2x16x1xf32>
    %cst_42 = arith.constant dense<0.000000e+00> : vector<16x1xf32>
    %77 = vector.multi_reduction <add>, %76, %cst_42 [0] : vector<2x16x1xf32> to vector<16x1xf32>
    %78 = vector.shape_cast %77 : vector<16x1xf32> to vector<1x16x1xf32>
    %79 = arith.mulf %74, %74 : vector<2x16x128xf32>
    %cst_43 = arith.constant dense<0.000000e+00> : vector<2x16xf32>
    %80 = vector.multi_reduction <add>, %79, %cst_43 [2] : vector<2x16x128xf32> to vector<2x16xf32>
    %81 = vector.shape_cast %80 : vector<2x16xf32> to vector<2x16x1xf32>
    %cst_44 = arith.constant dense<0.000000e+00> : vector<16x1xf32>
    %82 = vector.multi_reduction <add>, %81, %cst_44 [0] : vector<2x16x1xf32> to vector<16x1xf32>
    %83 = vector.shape_cast %82 : vector<16x1xf32> to vector<1x16x1xf32>
    %cst_45 = arith.constant 1.562500e-02 : f32
    %84 = vector.broadcast %cst_45 : f32 to vector<1x16x1xf32>
    %85 = arith.mulf %78, %84 : vector<1x16x1xf32>
    %cst_46 = arith.constant 1.562500e-02 : f32
    %86 = vector.broadcast %cst_46 : f32 to vector<1x16x1xf32>
    %87 = arith.mulf %83, %86 : vector<1x16x1xf32>
    %88 = arith.mulf %85, %85 : vector<1x16x1xf32>
    %89 = arith.subf %87, %88 : vector<1x16x1xf32>
    %cst_47 = arith.constant 0.000000e+00 : f32
    %90 = vector.broadcast %cst_47 : f32 to vector<1x16x1xf32>
    %91 = arith.maximumf %89, %90 : vector<1x16x1xf32>
    %92 = vector.broadcast %85 : vector<1x16x1xf32> to vector<2x16x128xf32>
    %93 = arith.subf %74, %92 : vector<2x16x128xf32>
    %cst_48 = arith.constant 9.99999974E-6 : f32
    %94 = vector.broadcast %cst_48 : f32 to vector<1x16x1xf32>
    %95 = arith.addf %91, %94 : vector<1x16x1xf32>
    %96 = math.rsqrt %95 : vector<1x16x1xf32>
    %97 = vector.broadcast %96 : vector<1x16x1xf32> to vector<2x16x128xf32>
    %98 = arith.mulf %93, %97 : vector<2x16x128xf32>
    %99 = vector.shape_cast %98 : vector<2x16x128xf32> to vector<32x128xf32>
    %c0_49 = arith.constant 0 : index
    %c0_50 = arith.constant 0 : index
    %100 = vector.load %arg12[%c0_49, %c0_50] : memref<32x128xf32, #tpu.memory_space<vmem>>, vector<32x128xf32>
    %c0_51 = arith.constant 0 : index
    %c0_52 = arith.constant 0 : index
    %101 = vector.load %arg9[%c0_51, %c0_52] : memref<128x128xf32, #tpu.memory_space<vmem>>, vector<128x128xf32>
    %cst_53 = arith.constant dense<0.000000e+00> : vector<32x128xf32>
    %102 = tpu.matmul %99, %101, %cst_53 {dimension_numbers = #tpu.dot_dimension_numbers<[1], [0], [0], [1], [0, 0, 1, 1], [], []>} : vector<32x128xf32>, vector<128x128xf32>, vector<32x128xf32> -> vector<32x128xf32>
    %103 = arith.addf %100, %102 : vector<32x128xf32>
    %c0_54 = arith.constant 0 : index
    %c0_55 = arith.constant 0 : index
    %104 = vector.load %arg12[%c0_54, %c0_55] : memref<32x128xf32, #tpu.memory_space<vmem>>, vector<32x128xf32>
    tpu.vector_store %arg12[%c0_54, %c0_55], %103 {strides = array<i32>} : memref<32x128xf32, #tpu.memory_space<vmem>>, vector<32x128xf32>,
    %c0_56 = arith.constant 0 : index
    %c0_57 = arith.constant 0 : index
    %105 = vector.load %arg6[%c0_56, %c0_57] : memref<128x128xf32, #tpu.memory_space<vmem>>, vector<128x128xf32>
    %106 = vector.shape_cast %99 : vector<32x128xf32> to vector<2x16x128xf32>
    "tpu.trace_start"() <{level = 10 : i32, message = "bij,bjd->bid"}> : () -> ()
    %cst_58 = arith.constant dense<0.000000e+00> : vector<2x16x128xf32>
    %107 = tpu.matmul %0, %106, %cst_58 {dimension_numbers = #tpu.dot_dimension_numbers<[2], [1], [1], [2], [0, 0, 0, 1, 1, 2], [0], [0]>} : vector<2x16x16xf32>, vector<2x16x128xf32>, vector<2x16x128xf32> -> vector<2x16x128xf32>
    "tpu.trace_stop"() : () -> ()
    %108 = vector.shape_cast %107 : vector<2x16x128xf32> to vector<32x128xf32>
    %cst_59 = arith.constant dense<0.000000e+00> : vector<32x128xf32>
    %109 = tpu.matmul %108, %105, %cst_59 {dimension_numbers = #tpu.dot_dimension_numbers<[1], [0], [0], [1], [0, 0, 1, 1], [], []>} : vector<32x128xf32>, vector<128x128xf32>, vector<32x128xf32> -> vector<32x128xf32>
    %c0_60 = arith.constant 0 : index
    %c0_61 = arith.constant 0 : index
    %110 = vector.load %arg7[%c0_60, %c0_61] : memref<1x128xf32, #tpu.memory_space<vmem>>, vector<1x128xf32>
    %111 = vector.broadcast %110 : vector<1x128xf32> to vector<32x128xf32>
    %112 = arith.addf %109, %111 : vector<32x128xf32>
    %113 = arith.mulf %112, %112 : vector<32x128xf32>
    %cst_62 = arith.constant dense<0.000000e+00> : vector<32xf32>
    %114 = vector.multi_reduction <add>, %113, %cst_62 [1] : vector<32x128xf32> to vector<32xf32>
    %115 = vector.shape_cast %114 : vector<32xf32> to vector<32x1xf32>
    %cst_63 = arith.constant 1.000000e-24 : f32
    %116 = vector.broadcast %cst_63 : f32 to vector<32x1xf32>
    %117 = arith.maximumf %115, %116 : vector<32x1xf32>
    %118 = math.rsqrt %117 : vector<32x1xf32>
    %119 = vector.broadcast %118 : vector<32x1xf32> to vector<32x128xf32>
    %120 = arith.mulf %112, %119 : vector<32x128xf32>
    %c0_64 = arith.constant 0 : index
    %c0_65 = arith.constant 0 : index
    %121 = vector.load %arg12[%c0_64, %c0_65] : memref<32x128xf32, #tpu.memory_space<vmem>>, vector<32x128xf32>
    %c0_66 = arith.constant 0 : index
    %c0_67 = arith.constant 0 : index
    %122 = vector.load %arg10[%c0_66, %c0_67] : memref<128x128xf32, #tpu.memory_space<vmem>>, vector<128x128xf32>
    %cst_68 = arith.constant dense<0.000000e+00> : vector<32x128xf32>
    %123 = tpu.matmul %120, %122, %cst_68 {dimension_numbers = #tpu.dot_dimension_numbers<[1], [0], [0], [1], [0, 0, 1, 1], [], []>} : vector<32x128xf32>, vector<128x128xf32>, vector<32x128xf32> -> vector<32x128xf32>
    %124 = arith.addf %121, %123 : vector<32x128xf32>
    %c0_69 = arith.constant 0 : index
    %c0_70 = arith.constant 0 : index
    %125 = vector.load %arg12[%c0_69, %c0_70] : memref<32x128xf32, #tpu.memory_space<vmem>>, vector<32x128xf32>
    tpu.vector_store %arg12[%c0_69, %c0_70], %124 {strides = array<i32>} : memref<32x128xf32, #tpu.memory_space<vmem>>, vector<32x128xf32>,
    return
  }
}

</mosaic_0001>

<llo_original>
// kernel: gcn_encoder_node_forward.1
$region0: #{gcn_encoder_node_forward.1}
  #allocation0 [shape = 'u32[]', space=smem, size = 0x4, offset = 0x4, fixed_abs, tag = 'smem constant byte address 0x4 - core index']
  #allocation1 [shape = 'u32[144,128]{1,0:T(1,128)}', space=vmem, size = 0x12000, scoped, tag = 'internal scratch']
  %s0 = inlined_call_operand.vmem [shape: f32[2,16,16], index: 0, kind: input, shape index: {}]
  %s1 = inlined_call_operand.vmem [shape: f32[2,16,8], index: 1, kind: input, shape index: {}]
  %s2 = inlined_call_operand.vmem [shape: f32[8,128], index: 2, kind: input, shape index: {}]
  %s3 = inlined_call_operand.vmem [shape: f32[1,128], index: 3, kind: input, shape index: {}]
  %s4 = inlined_call_operand.vmem [shape: f32[128,128], index: 4, kind: input, shape index: {}]
  %s5 = inlined_call_operand.vmem [shape: f32[1,128], index: 5, kind: input, shape index: {}]
  %s6 = inlined_call_operand.vmem [shape: f32[128,128], index: 6, kind: input, shape index: {}]
  %s7 = inlined_call_operand.vmem [shape: f32[1,128], index: 7, kind: input, shape index: {}]
  %s8 = inlined_call_operand.vmem [shape: f32[128,128], index: 8, kind: input, shape index: {}]
  %s9 = inlined_call_operand.vmem [shape: f32[128,128], index: 9, kind: input, shape index: {}]
  %s10 = inlined_call_operand.vmem [shape: f32[128,128], index: 10, kind: input, shape index: {}]
  %s11 = inlined_call_operand.vmem [shape: f32[1,128], index: 11, kind: input, shape index: {}]
  %s12 = inlined_call_operand.vmem [shape: f32[32,128], index: 12, kind: output, shape index: {}]
  %s13 = sld [smem:[#allocation0]]
  $region58: #{gcn_encoder_node_forward.1} parent=0
    _
  %s15 = ssub.s32 1, %s13
  %s16 = scalar_select 0, %s15, %s13
  // Predicated region
  $region2: #{gcn_encoder_node_forward.1} parent=0 // pred_check
    _
  $region3: #{gcn_encoder_node_forward.1} parent=0 // pred_check_branch
    %18 = sbr.rel (0) target = $region5
  $region4: #{gcn_encoder_node_forward.1} parent=0 // pred_region
    _
  $region5: #{gcn_encoder_node_forward.1} parent=0 // pred_fallthru
    _
  // Predicated region
  $region6: #{gcn_encoder_node_forward.1} parent=0 // pred_check
    _
  $region7: #{gcn_encoder_node_forward.1} parent=0 // pred_check_branch
    %20 = sbr.rel (0) target = $region9
  $region8: #{gcn_encoder_node_forward.1} parent=0 // pred_region
    _
  $region9: #{gcn_encoder_node_forward.1} parent=0 // pred_fallthru
    _
  // Predicated region
  $region10: #{gcn_encoder_node_forward.1} parent=0 // pred_check
    _
  $region11: #{gcn_encoder_node_forward.1} parent=0 // pred_check_branch
    %22 = sbr.rel (0) target = $region13
  $region12: #{gcn_encoder_node_forward.1} parent=0 // pred_region
    _
  $region13: #{gcn_encoder_node_forward.1} parent=0 // pred_fallthru
    _
  // Predicated region
  $region14: #{gcn_encoder_node_forward.1} parent=0 // pred_check
    _
  $region15: #{gcn_encoder_node_forward.1} parent=0 // pred_check_branch
    %24 = sbr.rel (0) target = $region17
  $region16: #{gcn_encoder_node_forward.1} parent=0 // pred_region
    _
  $region17: #{gcn_encoder_node_forward.1} parent=0 // pred_fallthru
    _
  // Predicated region
  $region18: #{gcn_encoder_node_forward.1} parent=0 // pred_check
    _
  $region19: #{gcn_encoder_node_forward.1} parent=0 // pred_check_branch
    %26 = sbr.rel (0) target = $region21
  $region20: #{gcn_encoder_node_forward.1} parent=0 // pred_region
    _
  $region21: #{gcn_encoder_node_forward.1} parent=0 // pred_fallthru
    _
  // Predicated region
  $region22: #{gcn_encoder_node_forward.1} parent=0 // pred_check
    _
  $region23: #{gcn_encoder_node_forward.1} parent=0 // pred_check_branch
    %28 = sbr.rel (0) target = $region25
  $region24: #{gcn_encoder_node_forward.1} parent=0 // pred_region
    _
  $region25: #{gcn_encoder_node_forward.1} parent=0 // pred_fallthru
    _
  // Predicated region
  $region26: #{gcn_encoder_node_forward.1} parent=0 // pred_check
    _
  $region27: #{gcn_encoder_node_forward.1} parent=0 // pred_check_branch
    %30 = sbr.rel (0) target = $region29
  $region28: #{gcn_encoder_node_forward.1} parent=0 // pred_region
    _
  $region29: #{gcn_encoder_node_forward.1} parent=0 // pred_fallthru
    _
  // Predicated region
  $region30: #{gcn_encoder_node_forward.1} parent=0 // pred_check
    _
  $region31: #{gcn_encoder_node_forward.1} parent=0 // pred_check_branch
    %32 = sbr.rel (0) target = $region33
  $region32: #{gcn_encoder_node_forward.1} parent=0 // pred_region
    _
  $region33: #{gcn_encoder_node_forward.1} parent=0 // pred_fallthru
    _
  // Predicated region
  $region34: #{gcn_encoder_node_forward.1} parent=0 // pred_check
    _
  $region35: #{gcn_encoder_node_forward.1} parent=0 // pred_check_branch
    %34 = sbr.rel (0) target = $region37
  $region36: #{gcn_encoder_node_forward.1} parent=0 // pred_region
    _
  $region37: #{gcn_encoder_node_forward.1} parent=0 // pred_fallthru
    _
  // Predicated region
  $region38: #{gcn_encoder_node_forward.1} parent=0 // pred_check
    _
  $region39: #{gcn_encoder_node_forward.1} parent=0 // pred_check_branch
    %36 = sbr.rel (0) target = $region41
  $region40: #{gcn_encoder_node_forward.1} parent=0 // pred_region
    _
  $region41: #{gcn_encoder_node_forward.1} parent=0 // pred_fallthru
    _
  // Predicated region
  $region42: #{gcn_encoder_node_forward.1} parent=0 // pred_check
    _
  $region43: #{gcn_encoder_node_forward.1} parent=0 // pred_check_branch
    %38 = sbr.rel (0) target = $region45
  $region44: #{gcn_encoder_node_forward.1} parent=0 // pred_region
    _
  $region45: #{gcn_encoder_node_forward.1} parent=0 // pred_fallthru
    _
  // Predicated region
  $region46: #{gcn_encoder_node_forward.1} parent=0 // pred_check
    _
  $region47: #{gcn_encoder_node_forward.1} parent=0 // pred_check_branch
    %40 = sbr.rel (0) target = $region49
  $region48: #{gcn_encoder_node_forward.1} parent=0 // pred_region
    _
  $region49: #{gcn_encoder_node_forward.1} parent=0 // pred_fallthru
    _
  %v41 = vld [vmem:[%s0] sm:$0xff]
  %v42 = vld [vmem:[%s0 + $0x8] sm:$0xff]
  %v43 = vld [vmem:[%s0 + $0x10] sm:$0xff]
  %v44 = vld [vmem:[%s0 + $0x18] sm:$0xff]
  %v45 = vld [vmem:[%s11] sm:$0x1]
  %v47 = vlaneseq
  %v48 = vshrl.u32 %v47, 7
  %v49 = vsub.s32 0, %v48
  %v50 = vrot.slane %v45, %v49
  %52 = vst [vmem:[%s12] sm:$0xff] %v50
  %53 = vst [vmem:[%s12 + $0x8] sm:$0xff] %v50
  %54 = vst [vmem:[%s12 + $0x10] sm:$0xff] %v50
  %55 = vst [vmem:[%s12 + $0x18] sm:$0xff] %v50
  %v56 = vld [vmem:[%s1] sm:$0xff]
  %v57 = vld [vmem:[%s1 + $0x8] sm:$0xff]
  %v58 = vld [vmem:[%s1 + $0x10] sm:$0xff]
  %v59 = vld [vmem:[%s1 + $0x18] sm:$0xff]
  %v60 = vld [vmem:[%s2] sm:$0xff]
  %vm61 = vcmask 130048
  %v63 = vsel %vm61, %v41, 0
  %v66 = vsel %vm61, %v42, 0
  %68 = vmatprep.subr.mxu0 0.0
  %69 = vmatpush1.msra.mxu0 0.0
  %70 = vmatprep.subr.mxu0 0.0
  %71 = vmatpush1.msra.mxu0 0.0
  %72 = vmatprep.subr.mxu0 0.0
  %73 = vmatpush1.msra.mxu0 0.0
  %74 = vmatprep.subr.mxu0 0.0
  %75 = vmatpush1.msra.mxu0 0.0
  %76 = vmatprep.subr.mxu0 0.0
  %77 = vmatpush1.msra.mxu0 0.0
  %78 = vmatprep.subr.mxu0 0.0
  %79 = vmatpush1.msra.mxu0 0.0
  %80 = vmatprep.subr.mxu0 0.0
  %81 = vmatpush1.msra.mxu0 0.0
  %82 = vmatprep.subr.mxu0 0.0
  %83 = vmatpush1.msra.mxu0 0.0
  %84 = vmatprep.subr.mxu0 0.0
  %85 = vmatpush1.msra.mxu0 0.0
  %86 = vmatprep.subr.mxu0 0.0
  %87 = vmatpush1.msra.mxu0 0.0
  %88 = vmatprep.subr.mxu0 0.0
  %89 = vmatpush1.msra.mxu0 0.0
  %90 = vmatprep.subr.mxu0 0.0
  %91 = vmatpush1.msra.mxu0 0.0
  %92 = vmatprep.subr.mxu0 0.0
  %93 = vmatpush1.msra.mxu0 0.0
  %94 = vmatprep.subr.mxu0 0.0
  %95 = vmatpush1.msra.mxu0 0.0
  %96 = vmatprep.subr.mxu0 0.0
  %97 = vmatpush1.msra.mxu0 %v57
  %98 = vmatprep.subr.mxu0 0.0
  %99 = vmatpush1.msra.mxu0 %v56
  %100 = vmatprep.subr.mxu0 0.0
  %101 = vmatpush2.msra.mxu0 0.0
  %102 = vmatprep.subr.mxu0 0.0
  %103 = vmatpush2.msra.mxu0 0.0
  %104 = vmatprep.subr.mxu0 0.0
  %105 = vmatpush2.msra.mxu0 0.0
  %106 = vmatprep.subr.mxu0 0.0
  %107 = vmatpush2.msra.mxu0 0.0
  %108 = vmatprep.subr.mxu0 0.0
  %109 = vmatpush2.msra.mxu0 0.0
  %110 = vmatprep.subr.mxu0 0.0
  %111 = vmatpush2.msra.mxu0 0.0
  %112 = vmatprep.subr.mxu0 0.0
  %113 = vmatpush2.msra.mxu0 0.0
  %114 = vmatprep.subr.mxu0 0.0
  %115 = vmatpush2.msra.mxu0 0.0
  %116 = vmatprep.subr.mxu0 0.0
  %117 = vmatpush2.msra.mxu0 0.0
  %118 = vmatprep.subr.mxu0 0.0
  %119 = vmatpush2.msra.mxu0 0.0
  %120 = vmatprep.subr.mxu0 0.0
  %121 = vmatpush2.msra.mxu0 0.0
  %122 = vmatprep.subr.mxu0 0.0
  %123 = vmatpush2.msra.mxu0 0.0
  %124 = vmatprep.subr.mxu0 0.0
  %125 = vmatpush2.msra.mxu0 0.0
  %126 = vmatprep.subr.mxu0 0.0
  %127 = vmatpush2.msra.mxu0 0.0
  %128 = vmatprep.subr.mxu0 0.0
  %129 = vmatpush2.msra.mxu0 0.0
  %130 = vmatprep.subr.mxu0 0.0
  %131 = vmatpush2.msra.mxu0 0.0
  %132 = vmatprep.mubr.f32.mxu0 0.0
  %133 = vmatmul.mubr.f32.gmra.mxu0 %v63
  %v134 = vpop.f32.mrf.mxu0
  %v135 = vadd.f32 0.0, %v134
  %v136 = vpop.f32.mrf.mxu0
  %137 = vmatprep.mubr.f32.mxu0 0.0
  %138 = vmatmul.mubr.f32.gmra.mxu0 %v66
  %v139 = vpop.f32.mrf.mxu0
  %v140 = vadd.f32 0.0, %v139
  %v141 = vpop.f32.mrf.mxu0
  %142 = vdwg.mxu0
  %v144 = vsel %vm61, %v43, 0
  %v147 = vsel %vm61, %v44, 0
  %149 = vmatprep.subr.mxu0 0.0
  %150 = vmatpush1.msra.mxu0 0.0
  %151 = vmatprep.subr.mxu0 0.0
  %152 = vmatpush1.msra.mxu0 0.0
  %153 = vmatprep.subr.mxu0 0.0
  %154 = vmatpush1.msra.mxu0 0.0
  %155 = vmatprep.subr.mxu0 0.0
  %156 = vmatpush1.msra.mxu0 0.0
  %157 = vmatprep.subr.mxu0 0.0
  %158 = vmatpush1.msra.mxu0 0.0
  %159 = vmatprep.subr.mxu0 0.0
  %160 = vmatpush1.msra.mxu0 0.0
  %161 = vmatprep.subr.mxu0 0.0
  %162 = vmatpush1.msra.mxu0 0.0
  %163 = vmatprep.subr.mxu0 0.0
  %164 = vmatpush1.msra.mxu0 0.0
  %165 = vmatprep.subr.mxu0 0.0
  %166 = vmatpush1.msra.mxu0 0.0
  %167 = vmatprep.subr.mxu0 0.0
  %168 = vmatpush1.msra.mxu0 0.0
  %169 = vmatprep.subr.mxu0 0.0
  %170 = vmatpush1.msra.mxu0 0.0
  %171 = vmatprep.subr.mxu0 0.0
  %172 = vmatpush1.msra.mxu0 0.0
  %173 = vmatprep.subr.mxu0 0.0
  %174 = vmatpush1.msra.mxu0 0.0
  %175 = vmatprep.subr.mxu0 0.0
  %176 = vmatpush1.msra.mxu0 0.0
  %177 = vmatprep.subr.mxu0 0.0
  %178 = vmatpush1.msra.mxu0 %v59
  %179 = vmatprep.subr.mxu0 0.0
  %180 = vmatpush1.msra.mxu0 %v58
  %181 = vmatprep.subr.mxu0 0.0
  %182 = vmatpush2.msra.mxu0 0.0
  %183 = vmatprep.subr.mxu0 0.0
  %184 = vmatpush2.msra.mxu0 0.0
  %185 = vmatprep.subr.mxu0 0.0
  %186 = vmatpush2.msra.mxu0 0.0
  %187 = vmatprep.subr.mxu0 0.0
  %188 = vmatpush2.msra.mxu0 0.0
  %189 = vmatprep.subr.mxu0 0.0
  %190 = vmatpush2.msra.mxu0 0.0
  %191 = vmatprep.subr.mxu0 0.0
  %192 = vmatpush2.msra.mxu0 0.0
  %193 = vmatprep.subr.mxu0 0.0
  %194 = vmatpush2.msra.mxu0 0.0
  %195 = vmatprep.subr.mxu0 0.0
  %196 = vmatpush2.msra.mxu0 0.0
  %197 = vmatprep.subr.mxu0 0.0
  %198 = vmatpush2.msra.mxu0 0.0
  %199 = vmatprep.subr.mxu0 0.0
  %200 = vmatpush2.msra.mxu0 0.0
  %201 = vmatprep.subr.mxu0 0.0
  %202 = vmatpush2.msra.mxu0 0.0
  %203 = vmatprep.subr.mxu0 0.0
  %204 = vmatpush2.msra.mxu0 0.0
  %205 = vmatprep.subr.mxu0 0.0
  %206 = vmatpush2.msra.mxu0 0.0
  %207 = vmatprep.subr.mxu0 0.0
  %208 = vmatpush2.msra.mxu0 0.0
  %209 = vmatprep.subr.mxu0 0.0
  %210 = vmatpush2.msra.mxu0 0.0
  %211 = vmatprep.subr.mxu0 0.0
  %212 = vmatpush2.msra.mxu0 0.0
  %213 = vmatprep.mubr.f32.mxu0 0.0
  %214 = vmatmul.mubr.f32.gmra.mxu0 %v144
  %v215 = vpop.f32.mrf.mxu0
  %v216 = vadd.f32 0.0, %v215
  %v217 = vpop.f32.mrf.mxu0
  %218 = vmatprep.mubr.f32.mxu0 0.0
  %219 = vmatmul.mubr.f32.gmra.mxu0 %v147
  %v220 = vpop.f32.mrf.mxu0
  %v221 = vadd.f32 0.0, %v220
  %v222 = vpop.f32.mrf.mxu0
  %223 = vdwg.mxu0
  %v224 = vld [vmem:[%s3] sm:$0x1]
  %v226 = vlaneseq
  %v227 = vshrl.u32 %v226, 7
  %v228 = vsub.s32 0, %v227
  %v229 = vrot.slane %v224, %v228
  %vm231 = vcmask 64512
  %v233 = vsel %vm231, %v135, 0
  %v236 = vsel %vm231, %v140, 0
  %v239 = vsel %vm231, %v216, 0
  %v242 = vsel %vm231, %v221, 0
  %244 = vmatprep.subr.mxu0 0.0
  %245 = vmatpush1.msra.mxu0 0.0
  %246 = vmatprep.subr.mxu0 0.0
  %247 = vmatpush1.msra.mxu0 0.0
  %248 = vmatprep.subr.mxu0 0.0
  %249 = vmatpush1.msra.mxu0 0.0
  %250 = vmatprep.subr.mxu0 0.0
  %251 = vmatpush1.msra.mxu0 0.0
  %252 = vmatprep.subr.mxu0 0.0
  %253 = vmatpush1.msra.mxu0 0.0
  %254 = vmatprep.subr.mxu0 0.0
  %255 = vmatpush1.msra.mxu0 0.0
  %256 = vmatprep.subr.mxu0 0.0
  %257 = vmatpush1.msra.mxu0 0.0
  %258 = vmatprep.subr.mxu0 0.0
  %259 = vmatpush1.msra.mxu0 0.0
  %260 = vmatprep.subr.mxu0 0.0
  %261 = vmatpush1.msra.mxu0 0.0
  %262 = vmatprep.subr.mxu0 0.0
  %263 = vmatpush1.msra.mxu0 0.0
  %264 = vmatprep.subr.mxu0 0.0
  %265 = vmatpush1.msra.mxu0 0.0
  %266 = vmatprep.subr.mxu0 0.0
  %267 = vmatpush1.msra.mxu0 0.0
  %268 = vmatprep.subr.mxu0 0.0
  %269 = vmatpush1.msra.mxu0 0.0
  %270 = vmatprep.subr.mxu0 0.0
  %271 = vmatpush1.msra.mxu0 0.0
  %272 = vmatprep.subr.mxu0 0.0
  %273 = vmatpush1.msra.mxu0 0.0
  %274 = vmatprep.subr.mxu0 0.0
  %275 = vmatpush1.msra.mxu0 %v60
  %276 = vmatprep.subr.mxu0 0.0
  %277 = vmatpush2.msra.mxu0 0.0
  %278 = vmatprep.subr.mxu0 0.0
  %279 = vmatpush2.msra.mxu0 0.0
  %280 = vmatprep.subr.mxu0 0.0
  %281 = vmatpush2.msra.mxu0 0.0
  %282 = vmatprep.subr.mxu0 0.0
  %283 = vmatpush2.msra.mxu0 0.0
  %284 = vmatprep.subr.mxu0 0.0
  %285 = vmatpush2.msra.mxu0 0.0
  %286 = vmatprep.subr.mxu0 0.0
  %287 = vmatpush2.msra.mxu0 0.0
  %288 = vmatprep.subr.mxu0 0.0
  %289 = vmatpush2.msra.mxu0 0.0
  %290 = vmatprep.subr.mxu0 0.0
  %291 = vmatpush2.msra.mxu0 0.0
  %292 = vmatprep.subr.mxu0 0.0
  %293 = vmatpush2.msra.mxu0 0.0
  %294 = vmatprep.subr.mxu0 0.0
  %295 = vmatpush2.msra.mxu0 0.0
  %296 = vmatprep.subr.mxu0 0.0
  %297 = vmatpush2.msra.mxu0 0.0
  %298 = vmatprep.subr.mxu0 0.0
  %299 = vmatpush2.msra.mxu0 0.0
  %300 = vmatprep.subr.mxu0 0.0
  %301 = vmatpush2.msra.mxu0 0.0
  %302 = vmatprep.subr.mxu0 0.0
  %303 = vmatpush2.msra.mxu0 0.0
  %304 = vmatprep.subr.mxu0 0.0
  %305 = vmatpush2.msra.mxu0 0.0
  %306 = vmatprep.subr.mxu0 0.0
  %307 = vmatpush2.msra.mxu0 0.0
  %308 = vmatprep.mubr.f32.mxu0 0.0
  %309 = vmatmul.mubr.f32.gmra.mxu0 %v233
  %v310 = vpop.f32.mrf.mxu0
  %v311 = vadd.f32 %v229, %v310
  %v312 = vpop.f32.mrf.mxu0
  %313 = vmatprep.mubr.f32.mxu0 0.0
  %314 = vmatmul.mubr.f32.gmra.mxu0 %v236
  %v315 = vpop.f32.mrf.mxu0
  %v316 = vadd.f32 %v229, %v315
  %v317 = vpop.f32.mrf.mxu0
  %318 = vmatprep.mubr.f32.mxu0 0.0
  %319 = vmatmul.mubr.f32.gmra.mxu0 %v239
  %v320 = vpop.f32.mrf.mxu0
  %v321 = vadd.f32 %v229, %v320
  %v322 = vpop.f32.mrf.mxu0
  %323 = vmatprep.mubr.f32.mxu0 0.0
  %324 = vmatmul.mubr.f32.gmra.mxu0 %v242
  %v325 = vpop.f32.mrf.mxu0
  %v326 = vadd.f32 %v229, %v325
  %v327 = vpop.f32.mrf.mxu0
  %328 = vdwg.mxu0
  %v329 = vmul.f32 %v311, %v311
  %v330 = vmul.f32 %v316, %v316
  %v331 = vmul.f32 %v321, %v321
  %v332 = vmul.f32 %v326, %v326
  %333 = vadd.xlane.f32.xlu0 %v329
  %v334 = vpop.xlane.xlu0 %333
  %335 = vadd.xlane.f32.xlu0 %v330
  %v336 = vpop.xlane.xlu0 %335
  %337 = vadd.xlane.f32.xlu0 %v331
  %v338 = vpop.xlane.xlu0 %337
  %339 = vadd.xlane.f32.xlu0 %v332
  %v340 = vpop.xlane.xlu0 %339
  %v341 = vmax.f32 %v334, 1e-24
  %v342 = vmax.f32 %v336, 1e-24
  %v343 = vmax.f32 %v338, 1e-24
  %v344 = vmax.f32 %v340, 1e-24
  %v345 = vrsqrt.pop %v341
  %v346 = vrsqrt.pop %v342
  %v347 = vrsqrt.pop %v343
  %v348 = vrsqrt.pop %v344
  %v349 = vmul.f32 %v311, %v345
  %v350 = vmul.f32 %v316, %v346
  %v351 = vmul.f32 %v321, %v347
  %v352 = vmul.f32 %v326, %v348
  %v353 = vmax.f32 %v349, 0.0
  %v354 = vmax.f32 %v350, 0.0
  %v355 = vmax.f32 %v351, 0.0
  %v356 = vmax.f32 %v352, 0.0
  %357 = vadd.xlane.f32.xlu0 %v353
  %v358 = vpop.xlane.xlu0 %357
  %359 = vadd.xlane.f32.xlu0 %v354
  %v360 = vpop.xlane.xlu0 %359
  %361 = vadd.xlane.f32.xlu0 %v355
  %v362 = vpop.xlane.xlu0 %361
  %363 = vadd.xlane.f32.xlu0 %v356
  %v364 = vpop.xlane.xlu0 %363
  %v365 = vadd.f32 %v358, %v362
  %v366 = vadd.f32 %v360, %v364
  %v367 = vmul.f32 %v353, %v353
  %v368 = vmul.f32 %v354, %v354
  %v369 = vmul.f32 %v355, %v355
  %v370 = vmul.f32 %v356, %v356
  %371 = vadd.xlane.f32.xlu0 %v367
  %v372 = vpop.xlane.xlu0 %371
  %373 = vadd.xlane.f32.xlu0 %v368
  %v374 = vpop.xlane.xlu0 %373
  %375 = vadd.xlane.f32.xlu0 %v369
  %v376 = vpop.xlane.xlu0 %375
  %377 = vadd.xlane.f32.xlu0 %v370
  %v378 = vpop.xlane.xlu0 %377
  %v379 = vadd.f32 %v372, %v376
  %v380 = vadd.f32 %v374, %v378
  %v381 = vmul.f32 %v365, 0.015625
  %v382 = vmul.f32 %v366, 0.015625
  %v383 = vmul.f32 %v379, 0.015625
  %v384 = vmul.f32 %v380, 0.015625
  %v385 = vmul.f32 %v381, %v381
  %v386 = vmul.f32 %v382, %v382
  %v387 = vsub.f32 %v383, %v385
  %v388 = vsub.f32 %v384, %v386
  %v389 = vmax.f32 %v387, 0.0
  %v390 = vmax.f32 %v388, 0.0
  %v391 = vsub.f32 %v353, %v381
  %v392 = vsub.f32 %v354, %v382
  %v393 = vsub.f32 %v355, %v381
  %v394 = vsub.f32 %v356, %v382
  %v395 = vadd.f32 %v389, 1e-05
  %v396 = vadd.f32 %v390, 1e-05
  %v397 = vrsqrt.pop %v395
  %v398 = vrsqrt.pop %v396
  %v399 = vmul.f32 %v391, %v397
  %v400 = vmul.f32 %v392, %v398
  %v401 = vmul.f32 %v393, %v397
  %v402 = vmul.f32 %v394, %v398
  %v403 = vld [vmem:[%s12] sm:$0xff]
  %v404 = vld [vmem:[%s12 + $0x8] sm:$0xff]
  %v405 = vld [vmem:[%s12 + $0x10] sm:$0xff]
  %v406 = vld [vmem:[%s12 + $0x18] sm:$0xff]
  %v407 = vld [vmem:[%s8] sm:$0xff]
  %v408 = vld [vmem:[%s8 + $0x8] sm:$0xff]
  %v409 = vld [vmem:[%s8 + $0x10] sm:$0xff]
  %v410 = vld [vmem:[%s8 + $0x18] sm:$0xff]
  %v411 = vld [vmem:[%s8 + $0x20] sm:$0xff]
  %v412 = vld [vmem:[%s8 + $0x28] sm:$0xff]
  %v413 = vld [vmem:[%s8 + $0x30] sm:$0xff]
  %v414 = vld [vmem:[%s8 + $0x38] sm:$0xff]
  %v415 = vld [vmem:[%s8 + $0x40] sm:$0xff]
  %v416 = vld [vmem:[%s8 + $0x48] sm:$0xff]
  %v417 = vld [vmem:[%s8 + $0x50] sm:$0xff]
  %v418 = vld [vmem:[%s8 + $0x58] sm:$0xff]
  %v419 = vld [vmem:[%s8 + $0x60] sm:$0xff]
  %v420 = vld [vmem:[%s8 + $0x68] sm:$0xff]
  %v421 = vld [vmem:[%s8 + $0x70] sm:$0xff]
  %v422 = vld [vmem:[%s8 + $0x78] sm:$0xff]
  %423 = vmatprep.subr.mxu0 0.0
  %424 = vmatpush1.msra.mxu0 %v422
  %425 = vmatprep.subr.mxu0 0.0
  %426 = vmatpush1.msra.mxu0 %v421
  %427 = vmatprep.subr.mxu0 0.0
  %428 = vmatpush1.msra.mxu0 %v420
  %429 = vmatprep.subr.mxu0 0.0
  %430 = vmatpush1.msra.mxu0 %v419
  %431 = vmatprep.subr.mxu0 0.0
  %432 = vmatpush1.msra.mxu0 %v418
  %433 = vmatprep.subr.mxu0 0.0
  %434 = vmatpush1.msra.mxu0 %v417
  %435 = vmatprep.subr.mxu0 0.0
  %436 = vmatpush1.msra.mxu0 %v416
  %437 = vmatprep.subr.mxu0 0.0
  %438 = vmatpush1.msra.mxu0 %v415
  %439 = vmatprep.subr.mxu0 0.0
  %440 = vmatpush1.msra.mxu0 %v414
  %441 = vmatprep.subr.mxu0 0.0
  %442 = vmatpush1.msra.mxu0 %v413
  %443 = vmatprep.subr.mxu0 0.0
  %444 = vmatpush1.msra.mxu0 %v412
  %445 = vmatprep.subr.mxu0 0.0
  %446 = vmatpush1.msra.mxu0 %v411
  %447 = vmatprep.subr.mxu0 0.0
  %448 = vmatpush1.msra.mxu0 %v410
  %449 = vmatprep.subr.mxu0 0.0
  %450 = vmatpush1.msra.mxu0 %v409
  %451 = vmatprep.subr.mxu0 0.0
  %452 = vmatpush1.msra.mxu0 %v408
  %453 = vmatprep.subr.mxu0 0.0
  %454 = vmatpush1.msra.mxu0 %v407
  %455 = vmatprep.subr.mxu0 0.0
  %456 = vmatpush2.msra.mxu0 0.0
  %457 = vmatprep.subr.mxu0 0.0
  %458 = vmatpush2.msra.mxu0 0.0
  %459 = vmatprep.subr.mxu0 0.0
  %460 = vmatpush2.msra.mxu0 0.0
  %461 = vmatprep.subr.mxu0 0.0
  %462 = vmatpush2.msra.mxu0 0.0
  %463 = vmatprep.subr.mxu0 0.0
  %464 = vmatpush2.msra.mxu0 0.0
  %465 = vmatprep.subr.mxu0 0.0
  %466 = vmatpush2.msra.mxu0 0.0
  %467 = vmatprep.subr.mxu0 0.0
  %468 = vmatpush2.msra.mxu0 0.0
  %469 = vmatprep.subr.mxu0 0.0
  %470 = vmatpush2.msra.mxu0 0.0
  %471 = vmatprep.subr.mxu0 0.0
  %472 = vmatpush2.msra.mxu0 0.0
  %473 = vmatprep.subr.mxu0 0.0
  %474 = vmatpush2.msra.mxu0 0.0
  %475 = vmatprep.subr.mxu0 0.0
  %476 = vmatpush2.msra.mxu0 0.0
  %477 = vmatprep.subr.mxu0 0.0
  %478 = vmatpush2.msra.mxu0 0.0
  %479 = vmatprep.subr.mxu0 0.0
  %480 = vmatpush2.msra.mxu0 0.0
  %481 = vmatprep.subr.mxu0 0.0
  %482 = vmatpush2.msra.mxu0 0.0
  %483 = vmatprep.subr.mxu0 0.0
  %484 = vmatpush2.msra.mxu0 0.0
  %485 = vmatprep.subr.mxu0 0.0
  %486 = vmatpush2.msra.mxu0 0.0
  %487 = vmatprep.mubr.f32.mxu0 0.0
  %488 = vmatmul.mubr.f32.gmra.mxu0 %v399
  %v489 = vpop.f32.mrf.mxu0
  %v490 = vadd.f32 0.0, %v489
  %v491 = vpop.f32.mrf.mxu0
  %492 = vmatprep.mubr.f32.mxu0 0.0
  %493 = vmatmul.mubr.f32.gmra.mxu0 %v400
  %v494 = vpop.f32.mrf.mxu0
  %v495 = vadd.f32 0.0, %v494
  %v496 = vpop.f32.mrf.mxu0
  %497 = vmatprep.mubr.f32.mxu0 0.0
  %498 = vmatmul.mubr.f32.gmra.mxu0 %v401
  %v499 = vpop.f32.mrf.mxu0
  %v500 = vadd.f32 0.0, %v499
  %v501 = vpop.f32.mrf.mxu0
  %502 = vmatprep.mubr.f32.mxu0 0.0
  %503 = vmatmul.mubr.f32.gmra.mxu0 %v402
  %v504 = vpop.f32.mrf.mxu0
  %v505 = vadd.f32 0.0, %v504
  %v506 = vpop.f32.mrf.mxu0
  %507 = vdwg.mxu0
  %v508 = vadd.f32 %v403, %v490
  %v509 = vadd.f32 %v404, %v495
  %v510 = vadd.f32 %v405, %v500
  %v511 = vadd.f32 %v406, %v505
  %512 = vst [vmem:[%s12] sm:$0xff] %v508
  %513 = vst [vmem:[%s12 + $0x8] sm:$0xff] %v509
  %514 = vst [vmem:[%s12 + $0x10] sm:$0xff] %v510
  %515 = vst [vmem:[%s12 + $0x18] sm:$0xff] %v511
  %v516 = vld [vmem:[%s4] sm:$0xff]
  %v517 = vld [vmem:[%s4 + $0x8] sm:$0xff]
  %v518 = vld [vmem:[%s4 + $0x10] sm:$0xff]
  %v519 = vld [vmem:[%s4 + $0x18] sm:$0xff]
  %v520 = vld [vmem:[%s4 + $0x20] sm:$0xff]
  %v521 = vld [vmem:[%s4 + $0x28] sm:$0xff]
  %v522 = vld [vmem:[%s4 + $0x30] sm:$0xff]
  %v523 = vld [vmem:[%s4 + $0x38] sm:$0xff]
  %v524 = vld [vmem:[%s4 + $0x40] sm:$0xff]
  %v525 = vld [vmem:[%s4 + $0x48] sm:$0xff]
  %v526 = vld [vmem:[%s4 + $0x50] sm:$0xff]
  %v527 = vld [vmem:[%s4 + $0x58] sm:$0xff]
  %v528 = vld [vmem:[%s4 + $0x60] sm:$0xff]
  %v529 = vld [vmem:[%s4 + $0x68] sm:$0xff]
  %v530 = vld [vmem:[%s4 + $0x70] sm:$0xff]
  %v531 = vld [vmem:[%s4 + $0x78] sm:$0xff]
  %532 = vmatprep.subr.mxu0 0.0
  %533 = vmatpush1.msra.mxu0 0.0
  %534 = vmatprep.subr.mxu0 0.0
  %535 = vmatpush1.msra.mxu0 0.0
  %536 = vmatprep.subr.mxu0 0.0
  %537 = vmatpush1.msra.mxu0 0.0
  %538 = vmatprep.subr.mxu0 0.0
  %539 = vmatpush1.msra.mxu0 0.0
  %540 = vmatprep.subr.mxu0 0.0
  %541 = vmatpush1.msra.mxu0 0.0
  %542 = vmatprep.subr.mxu0 0.0
  %543 = vmatpush1.msra.mxu0 0.0
  %544 = vmatprep.subr.mxu0 0.0
  %545 = vmatpush1.msra.mxu0 0.0
  %546 = vmatprep.subr.mxu0 0.0
  %547 = vmatpush1.msra.mxu0 0.0
  %548 = vmatprep.subr.mxu0 0.0
  %549 = vmatpush1.msra.mxu0 0.0
  %550 = vmatprep.subr.mxu0 0.0
  %551 = vmatpush1.msra.mxu0 0.0
  %552 = vmatprep.subr.mxu0 0.0
  %553 = vmatpush1.msra.mxu0 0.0
  %554 = vmatprep.subr.mxu0 0.0
  %555 = vmatpush1.msra.mxu0 0.0
  %556 = vmatprep.subr.mxu0 0.0
  %557 = vmatpush1.msra.mxu0 0.0
  %558 = vmatprep.subr.mxu0 0.0
  %559 = vmatpush1.msra.mxu0 0.0
  %560 = vmatprep.subr.mxu0 0.0
  %561 = vmatpush1.msra.mxu0 %v400
  %562 = vmatprep.subr.mxu0 0.0
  %563 = vmatpush1.msra.mxu0 %v399
  %564 = vmatprep.subr.mxu0 0.0
  %565 = vmatpush2.msra.mxu0 0.0
  %566 = vmatprep.subr.mxu0 0.0
  %567 = vmatpush2.msra.mxu0 0.0
  %568 = vmatprep.subr.mxu0 0.0
  %569 = vmatpush2.msra.mxu0 0.0
  %570 = vmatprep.subr.mxu0 0.0
  %571 = vmatpush2.msra.mxu0 0.0
  %572 = vmatprep.subr.mxu0 0.0
  %573 = vmatpush2.msra.mxu0 0.0
  %574 = vmatprep.subr.mxu0 0.0
  %575 = vmatpush2.msra.mxu0 0.0
  %576 = vmatprep.subr.mxu0 0.0
  %577 = vmatpush2.msra.mxu0 0.0
  %578 = vmatprep.subr.mxu0 0.0
  %579 = vmatpush2.msra.mxu0 0.0
  %580 = vmatprep.subr.mxu0 0.0
  %581 = vmatpush2.msra.mxu0 0.0
  %582 = vmatprep.subr.mxu0 0.0
  %583 = vmatpush2.msra.mxu0 0.0
  %584 = vmatprep.subr.mxu0 0.0
  %585 = vmatpush2.msra.mxu0 0.0
  %586 = vmatprep.subr.mxu0 0.0
  %587 = vmatpush2.msra.mxu0 0.0
  %588 = vmatprep.subr.mxu0 0.0
  %589 = vmatpush2.msra.mxu0 0.0
  %590 = vmatprep.subr.mxu0 0.0
  %591 = vmatpush2.msra.mxu0 0.0
  %592 = vmatprep.subr.mxu0 0.0
  %593 = vmatpush2.msra.mxu0 0.0
  %594 = vmatprep.subr.mxu0 0.0
  %595 = vmatpush2.msra.mxu0 0.0
  %596 = vmatprep.mubr.f32.mxu0 0.0
  %597 = vmatmul.mubr.f32.gmra.mxu0 %v63
  %v598 = vpop.f32.mrf.mxu0
  %v599 = vadd.f32 0.0, %v598
  %v600 = vpop.f32.mrf.mxu0
  %601 = vmatprep.mubr.f32.mxu0 0.0
  %602 = vmatmul.mubr.f32.gmra.mxu0 %v66
  %v603 = vpop.f32.mrf.mxu0
  %v604 = vadd.f32 0.0, %v603
  %v605 = vpop.f32.mrf.mxu0
  %606 = vdwg.mxu0
  %607 = vmatprep.subr.mxu0 0.0
  %608 = vmatpush1.msra.mxu0 0.0
  %609 = vmatprep.subr.mxu0 0.0
  %610 = vmatpush1.msra.mxu0 0.0
  %611 = vmatprep.subr.mxu0 0.0
  %612 = vmatpush1.msra.mxu0 0.0
  %613 = vmatprep.subr.mxu0 0.0
  %614 = vmatpush1.msra.mxu0 0.0
  %615 = vmatprep.subr.mxu0 0.0
  %616 = vmatpush1.msra.mxu0 0.0
  %617 = vmatprep.subr.mxu0 0.0
  %618 = vmatpush1.msra.mxu0 0.0
  %619 = vmatprep.subr.mxu0 0.0
  %620 = vmatpush1.msra.mxu0 0.0
  %621 = vmatprep.subr.mxu0 0.0
  %622 = vmatpush1.msra.mxu0 0.0
  %623 = vmatprep.subr.mxu0 0.0
  %624 = vmatpush1.msra.mxu0 0.0
  %625 = vmatprep.subr.mxu0 0.0
  %626 = vmatpush1.msra.mxu0 0.0
  %627 = vmatprep.subr.mxu0 0.0
  %628 = vmatpush1.msra.mxu0 0.0
  %629 = vmatprep.subr.mxu0 0.0
  %630 = vmatpush1.msra.mxu0 0.0
  %631 = vmatprep.subr.mxu0 0.0
  %632 = vmatpush1.msra.mxu0 0.0
  %633 = vmatprep.subr.mxu0 0.0
  %634 = vmatpush1.msra.mxu0 0.0
  %635 = vmatprep.subr.mxu0 0.0
  %636 = vmatpush1.msra.mxu0 %v402
  %637 = vmatprep.subr.mxu0 0.0
  %638 = vmatpush1.msra.mxu0 %v401
  %639 = vmatprep.subr.mxu0 0.0
  %640 = vmatpush2.msra.mxu0 0.0
  %641 = vmatprep.subr.mxu0 0.0
  %642 = vmatpush2.msra.mxu0 0.0
  %643 = vmatprep.subr.mxu0 0.0
  %644 = vmatpush2.msra.mxu0 0.0
  %645 = vmatprep.subr.mxu0 0.0
  %646 = vmatpush2.msra.mxu0 0.0
  %647 = vmatprep.subr.mxu0 0.0
  %648 = vmatpush2.msra.mxu0 0.0
  %649 = vmatprep.subr.mxu0 0.0
  %650 = vmatpush2.msra.mxu0 0.0
  %651 = vmatprep.subr.mxu0 0.0
  %652 = vmatpush2.msra.mxu0 0.0
  %653 = vmatprep.subr.mxu0 0.0
  %654 = vmatpush2.msra.mxu0 0.0
  %655 = vmatprep.subr.mxu0 0.0
  %656 = vmatpush2.msra.mxu0 0.0
  %657 = vmatprep.subr.mxu0 0.0
  %658 = vmatpush2.msra.mxu0 0.0
  %659 = vmatprep.subr.mxu0 0.0
  %660 = vmatpush2.msra.mxu0 0.0
  %661 = vmatprep.subr.mxu0 0.0
  %662 = vmatpush2.msra.mxu0 0.0
  %663 = vmatprep.subr.mxu0 0.0
  %664 = vmatpush2.msra.mxu0 0.0
  %665 = vmatprep.subr.mxu0 0.0
  %666 = vmatpush2.msra.mxu0 0.0
  %667 = vmatprep.subr.mxu0 0.0
  %668 = vmatpush2.msra.mxu0 0.0
  %669 = vmatprep.subr.mxu0 0.0
  %670 = vmatpush2.msra.mxu0 0.0
  %671 = vmatprep.mubr.f32.mxu0 0.0
  %672 = vmatmul.mubr.f32.gmra.mxu0 %v144
  %v673 = vpop.f32.mrf.mxu0
  %v674 = vadd.f32 0.0, %v673
  %v675 = vpop.f32.mrf.mxu0
  %676 = vmatprep.mubr.f32.mxu0 0.0
  %677 = vmatmul.mubr.f32.gmra.mxu0 %v147
  %v678 = vpop.f32.mrf.mxu0
  %v679 = vadd.f32 0.0, %v678
  %v680 = vpop.f32.mrf.mxu0
  %681 = vdwg.mxu0
  %v682 = vld [vmem:[%s5] sm:$0x1]
  %v684 = vlaneseq
  %v685 = vshrl.u32 %v684, 7
  %v686 = vsub.s32 0, %v685
  %v687 = vrot.slane %v682, %v686
  %689 = vmatprep.subr.mxu0 0.0
  %690 = vmatpush1.msra.mxu0 %v531
  %691 = vmatprep.subr.mxu0 0.0
  %692 = vmatpush1.msra.mxu0 %v530
  %693 = vmatprep.subr.mxu0 0.0
  %694 = vmatpush1.msra.mxu0 %v529
  %695 = vmatprep.subr.mxu0 0.0
  %696 = vmatpush1.msra.mxu0 %v528
  %697 = vmatprep.subr.mxu0 0.0
  %698 = vmatpush1.msra.mxu0 %v527
  %699 = vmatprep.subr.mxu0 0.0
  %700 = vmatpush1.msra.mxu0 %v526
  %701 = vmatprep.subr.mxu0 0.0
  %702 = vmatpush1.msra.mxu0 %v525
  %703 = vmatprep.subr.mxu0 0.0
  %704 = vmatpush1.msra.mxu0 %v524
  %705 = vmatprep.subr.mxu0 0.0
  %706 = vmatpush1.msra.mxu0 %v523
  %707 = vmatprep.subr.mxu0 0.0
  %708 = vmatpush1.msra.mxu0 %v522
  %709 = vmatprep.subr.mxu0 0.0
  %710 = vmatpush1.msra.mxu0 %v521
  %711 = vmatprep.subr.mxu0 0.0
  %712 = vmatpush1.msra.mxu0 %v520
  %713 = vmatprep.subr.mxu0 0.0
  %714 = vmatpush1.msra.mxu0 %v519
  %715 = vmatprep.subr.mxu0 0.0
  %716 = vmatpush1.msra.mxu0 %v518
  %717 = vmatprep.subr.mxu0 0.0
  %718 = vmatpush1.msra.mxu0 %v517
  %719 = vmatprep.subr.mxu0 0.0
  %720 = vmatpush1.msra.mxu0 %v516
  %721 = vmatprep.subr.mxu0 0.0
  %722 = vmatpush2.msra.mxu0 0.0
  %723 = vmatprep.subr.mxu0 0.0
  %724 = vmatpush2.msra.mxu0 0.0
  %725 = vmatprep.subr.mxu0 0.0
  %726 = vmatpush2.msra.mxu0 0.0
  %727 = vmatprep.subr.mxu0 0.0
  %728 = vmatpush2.msra.mxu0 0.0
  %729 = vmatprep.subr.mxu0 0.0
  %730 = vmatpush2.msra.mxu0 0.0
  %731 = vmatprep.subr.mxu0 0.0
  %732 = vmatpush2.msra.mxu0 0.0
  %733 = vmatprep.subr.mxu0 0.0
  %734 = vmatpush2.msra.mxu0 0.0
  %735 = vmatprep.subr.mxu0 0.0
  %736 = vmatpush2.msra.mxu0 0.0
  %737 = vmatprep.subr.mxu0 0.0
  %738 = vmatpush2.msra.mxu0 0.0
  %739 = vmatprep.subr.mxu0 0.0
  %740 = vmatpush2.msra.mxu0 0.0
  %741 = vmatprep.subr.mxu0 0.0
  %742 = vmatpush2.msra.mxu0 0.0
  %743 = vmatprep.subr.mxu0 0.0
  %744 = vmatpush2.msra.mxu0 0.0
  %745 = vmatprep.subr.mxu0 0.0
  %746 = vmatpush2.msra.mxu0 0.0
  %747 = vmatprep.subr.mxu0 0.0
  %748 = vmatpush2.msra.mxu0 0.0
  %749 = vmatprep.subr.mxu0 0.0
  %750 = vmatpush2.msra.mxu0 0.0
  %751 = vmatprep.subr.mxu0 0.0
  %752 = vmatpush2.msra.mxu0 0.0
  %753 = vmatprep.mubr.f32.mxu0 0.0
  %754 = vmatmul.mubr.f32.gmra.mxu0 %v599
  %v755 = vpop.f32.mrf.mxu0
  %v756 = vadd.f32 %v687, %v755
  %v757 = vpop.f32.mrf.mxu0
  %758 = vmatprep.mubr.f32.mxu0 0.0
  %759 = vmatmul.mubr.f32.gmra.mxu0 %v604
  %v760 = vpop.f32.mrf.mxu0
  %v761 = vadd.f32 %v687, %v760
  %v762 = vpop.f32.mrf.mxu0
  %763 = vmatprep.mubr.f32.mxu0 0.0
  %764 = vmatmul.mubr.f32.gmra.mxu0 %v674
  %v765 = vpop.f32.mrf.mxu0
  %v766 = vadd.f32 %v687, %v765
  %v767 = vpop.f32.mrf.mxu0
  %768 = vmatprep.mubr.f32.mxu0 0.0
  %769 = vmatmul.mubr.f32.gmra.mxu0 %v679
  %v770 = vpop.f32.mrf.mxu0
  %v771 = vadd.f32 %v687, %v770
  %v772 = vpop.f32.mrf.mxu0
  %773 = vdwg.mxu0
  %v774 = vmul.f32 %v756, %v756
  %v775 = vmul.f32 %v761, %v761
  %v776 = vmul.f32 %v766, %v766
  %v777 = vmul.f32 %v771, %v771
  %778 = vadd.xlane.f32.xlu0 %v774
  %v779 = vpop.xlane.xlu0 %778
  %780 = vadd.xlane.f32.xlu0 %v775
  %v781 = vpop.xlane.xlu0 %780
  %782 = vadd.xlane.f32.xlu0 %v776
  %v783 = vpop.xlane.xlu0 %782
  %784 = vadd.xlane.f32.xlu0 %v777
  %v785 = vpop.xlane.xlu0 %784
  %v786 = vmax.f32 %v779, 1e-24
  %v787 = vmax.f32 %v781, 1e-24
  %v788 = vmax.f32 %v783, 1e-24
  %v789 = vmax.f32 %v785, 1e-24
  %v790 = vrsqrt.pop %v786
  %v791 = vrsqrt.pop %v787
  %v792 = vrsqrt.pop %v788
  %v793 = vrsqrt.pop %v789
  %v794 = vmul.f32 %v756, %v790
  %v795 = vmul.f32 %v761, %v791
  %v796 = vmul.f32 %v766, %v792
  %v797 = vmul.f32 %v771, %v793
  %v798 = vmax.f32 %v794, 0.0
  %v799 = vmax.f32 %v795, 0.0
  %v800 = vmax.f32 %v796, 0.0
  %v801 = vmax.f32 %v797, 0.0
  %802 = vadd.xlane.f32.xlu0 %v798
  %v803 = vpop.xlane.xlu0 %802
  %804 = vadd.xlane.f32.xlu0 %v799
  %v805 = vpop.xlane.xlu0 %804
  %806 = vadd.xlane.f32.xlu0 %v800
  %v807 = vpop.xlane.xlu0 %806
  %808 = vadd.xlane.f32.xlu0 %v801
  %v809 = vpop.xlane.xlu0 %808
  %v810 = vadd.f32 %v803, %v807
  %v811 = vadd.f32 %v805, %v809
  %v812 = vmul.f32 %v798, %v798
  %v813 = vmul.f32 %v799, %v799
  %v814 = vmul.f32 %v800, %v800
  %v815 = vmul.f32 %v801, %v801
  %816 = vadd.xlane.f32.xlu0 %v812
  %v817 = vpop.xlane.xlu0 %816
  %818 = vadd.xlane.f32.xlu0 %v813
  %v819 = vpop.xlane.xlu0 %818
  %820 = vadd.xlane.f32.xlu0 %v814
  %v821 = vpop.xlane.xlu0 %820
  %822 = vadd.xlane.f32.xlu0 %v815
  %v823 = vpop.xlane.xlu0 %822
  %v824 = vadd.f32 %v817, %v821
  %v825 = vadd.f32 %v819, %v823
  %v826 = vmul.f32 %v810, 0.015625
  %v827 = vmul.f32 %v811, 0.015625
  %v828 = vmul.f32 %v824, 0.015625
  %v829 = vmul.f32 %v825, 0.015625
  %v830 = vmul.f32 %v826, %v826
  %v831 = vmul.f32 %v827, %v827
  %v832 = vsub.f32 %v828, %v830
  %v833 = vsub.f32 %v829, %v831
  %v834 = vmax.f32 %v832, 0.0
  %v835 = vmax.f32 %v833, 0.0
  %v836 = vsub.f32 %v798, %v826
  %v837 = vsub.f32 %v799, %v827
  %v838 = vsub.f32 %v800, %v826
  %v839 = vsub.f32 %v801, %v827
  %v840 = vadd.f32 %v834, 1e-05
  %v841 = vadd.f32 %v835, 1e-05
  %v842 = vrsqrt.pop %v840
  %v843 = vrsqrt.pop %v841
  %v844 = vmul.f32 %v836, %v842
  %v845 = vmul.f32 %v837, %v843
  %v846 = vmul.f32 %v838, %v842
  %v847 = vmul.f32 %v839, %v843
  %v848 = vld [vmem:[%s12] sm:$0xff]
  %v849 = vld [vmem:[%s12 + $0x8] sm:$0xff]
  %v850 = vld [vmem:[%s12 + $0x10] sm:$0xff]
  %v851 = vld [vmem:[%s12 + $0x18] sm:$0xff]
  %v852 = vld [vmem:[%s9] sm:$0xff]
  %v853 = vld [vmem:[%s9 + $0x8] sm:$0xff]
  %v854 = vld [vmem:[%s9 + $0x10] sm:$0xff]
  %v855 = vld [vmem:[%s9 + $0x18] sm:$0xff]
  %v856 = vld [vmem:[%s9 + $0x20] sm:$0xff]
  %v857 = vld [vmem:[%s9 + $0x28] sm:$0xff]
  %v858 = vld [vmem:[%s9 + $0x30] sm:$0xff]
  %v859 = vld [vmem:[%s9 + $0x38] sm:$0xff]
  %v860 = vld [vmem:[%s9 + $0x40] sm:$0xff]
  %v861 = vld [vmem:[%s9 + $0x48] sm:$0xff]
  %v862 = vld [vmem:[%s9 + $0x50] sm:$0xff]
  %v863 = vld [vmem:[%s9 + $0x58] sm:$0xff]
  %v864 = vld [vmem:[%s9 + $0x60] sm:$0xff]
  %v865 = vld [vmem:[%s9 + $0x68] sm:$0xff]
  %v866 = vld [vmem:[%s9 + $0x70] sm:$0xff]
  %v867 = vld [vmem:[%s9 + $0x78] sm:$0xff]
  %868 = vmatprep.subr.mxu0 0.0
  %869 = vmatpush1.msra.mxu0 %v867
  %870 = vmatprep.subr.mxu0 0.0
  %871 = vmatpush1.msra.mxu0 %v866
  %872 = vmatprep.subr.mxu0 0.0
  %873 = vmatpush1.msra.mxu0 %v865
  %874 = vmatprep.subr.mxu0 0.0
  %875 = vmatpush1.msra.mxu0 %v864
  %876 = vmatprep.subr.mxu0 0.0
  %877 = vmatpush1.msra.mxu0 %v863
  %878 = vmatprep.subr.mxu0 0.0
  %879 = vmatpush1.msra.mxu0 %v862
  %880 = vmatprep.subr.mxu0 0.0
  %881 = vmatpush1.msra.mxu0 %v861
  %882 = vmatprep.subr.mxu0 0.0
  %883 = vmatpush1.msra.mxu0 %v860
  %884 = vmatprep.subr.mxu0 0.0
  %885 = vmatpush1.msra.mxu0 %v859
  %886 = vmatprep.subr.mxu0 0.0
  %887 = vmatpush1.msra.mxu0 %v858
  %888 = vmatprep.subr.mxu0 0.0
  %889 = vmatpush1.msra.mxu0 %v857
  %890 = vmatprep.subr.mxu0 0.0
  %891 = vmatpush1.msra.mxu0 %v856
  %892 = vmatprep.subr.mxu0 0.0
  %893 = vmatpush1.msra.mxu0 %v855
  %894 = vmatprep.subr.mxu0 0.0
  %895 = vmatpush1.msra.mxu0 %v854
  %896 = vmatprep.subr.mxu0 0.0
  %897 = vmatpush1.msra.mxu0 %v853
  %898 = vmatprep.subr.mxu0 0.0
  %899 = vmatpush1.msra.mxu0 %v852
  %900 = vmatprep.subr.mxu0 0.0
  %901 = vmatpush2.msra.mxu0 0.0
  %902 = vmatprep.subr.mxu0 0.0
  %903 = vmatpush2.msra.mxu0 0.0
  %904 = vmatprep.subr.mxu0 0.0
  %905 = vmatpush2.msra.mxu0 0.0
  %906 = vmatprep.subr.mxu0 0.0
  %907 = vmatpush2.msra.mxu0 0.0
  %908 = vmatprep.subr.mxu0 0.0
  %909 = vmatpush2.msra.mxu0 0.0
  %910 = vmatprep.subr.mxu0 0.0
  %911 = vmatpush2.msra.mxu0 0.0
  %912 = vmatprep.subr.mxu0 0.0
  %913 = vmatpush2.msra.mxu0 0.0
  %914 = vmatprep.subr.mxu0 0.0
  %915 = vmatpush2.msra.mxu0 0.0
  %916 = vmatprep.subr.mxu0 0.0
  %917 = vmatpush2.msra.mxu0 0.0
  %918 = vmatprep.subr.mxu0 0.0
  %919 = vmatpush2.msra.mxu0 0.0
  %920 = vmatprep.subr.mxu0 0.0
  %921 = vmatpush2.msra.mxu0 0.0
  %922 = vmatprep.subr.mxu0 0.0
  %923 = vmatpush2.msra.mxu0 0.0
  %924 = vmatprep.subr.mxu0 0.0
  %925 = vmatpush2.msra.mxu0 0.0
  %926 = vmatprep.subr.mxu0 0.0
  %927 = vmatpush2.msra.mxu0 0.0
  %928 = vmatprep.subr.mxu0 0.0
  %929 = vmatpush2.msra.mxu0 0.0
  %930 = vmatprep.subr.mxu0 0.0
  %931 = vmatpush2.msra.mxu0 0.0
  %932 = vmatprep.mubr.f32.mxu0 0.0
  %933 = vmatmul.mubr.f32.gmra.mxu0 %v844
  %v934 = vpop.f32.mrf.mxu0
  %v935 = vadd.f32 0.0, %v934
  %v936 = vpop.f32.mrf.mxu0
  %937 = vmatprep.mubr.f32.mxu0 0.0
  %938 = vmatmul.mubr.f32.gmra.mxu0 %v845
  %v939 = vpop.f32.mrf.mxu0
  %v940 = vadd.f32 0.0, %v939
  %v941 = vpop.f32.mrf.mxu0
  %942 = vmatprep.mubr.f32.mxu0 0.0
  %943 = vmatmul.mubr.f32.gmra.mxu0 %v846
  %v944 = vpop.f32.mrf.mxu0
  %v945 = vadd.f32 0.0, %v944
  %v946 = vpop.f32.mrf.mxu0
  %947 = vmatprep.mubr.f32.mxu0 0.0
  %948 = vmatmul.mubr.f32.gmra.mxu0 %v847
  %v949 = vpop.f32.mrf.mxu0
  %v950 = vadd.f32 0.0, %v949
  %v951 = vpop.f32.mrf.mxu0
  %952 = vdwg.mxu0
  %v953 = vadd.f32 %v848, %v935
  %v954 = vadd.f32 %v849, %v940
  %v955 = vadd.f32 %v850, %v945
  %v956 = vadd.f32 %v851, %v950
  %957 = vst [vmem:[%s12] sm:$0xff] %v953
  %958 = vst [vmem:[%s12 + $0x8] sm:$0xff] %v954
  %959 = vst [vmem:[%s12 + $0x10] sm:$0xff] %v955
  %960 = vst [vmem:[%s12 + $0x18] sm:$0xff] %v956
  %v961 = vld [vmem:[%s6] sm:$0xff]
  %v962 = vld [vmem:[%s6 + $0x8] sm:$0xff]
  %v963 = vld [vmem:[%s6 + $0x10] sm:$0xff]
  %v964 = vld [vmem:[%s6 + $0x18] sm:$0xff]
  %v965 = vld [vmem:[%s6 + $0x20] sm:$0xff]
  %v966 = vld [vmem:[%s6 + $0x28] sm:$0xff]
  %v967 = vld [vmem:[%s6 + $0x30] sm:$0xff]
  %v968 = vld [vmem:[%s6 + $0x38] sm:$0xff]
  %v969 = vld [vmem:[%s6 + $0x40] sm:$0xff]
  %v970 = vld [vmem:[%s6 + $0x48] sm:$0xff]
  %v971 = vld [vmem:[%s6 + $0x50] sm:$0xff]
  %v972 = vld [vmem:[%s6 + $0x58] sm:$0xff]
  %v973 = vld [vmem:[%s6 + $0x60] sm:$0xff]
  %v974 = vld [vmem:[%s6 + $0x68] sm:$0xff]
  %v975 = vld [vmem:[%s6 + $0x70] sm:$0xff]
  %v976 = vld [vmem:[%s6 + $0x78] sm:$0xff]
  %977 = vmatprep.subr.mxu0 0.0
  %978 = vmatpush1.msra.mxu0 0.0
  %979 = vmatprep.subr.mxu0 0.0
  %980 = vmatpush1.msra.mxu0 0.0
  %981 = vmatprep.subr.mxu0 0.0
  %982 = vmatpush1.msra.mxu0 0.0
  %983 = vmatprep.subr.mxu0 0.0
  %984 = vmatpush1.msra.mxu0 0.0
  %985 = vmatprep.subr.mxu0 0.0
  %986 = vmatpush1.msra.mxu0 0.0
  %987 = vmatprep.subr.mxu0 0.0
  %988 = vmatpush1.msra.mxu0 0.0
  %989 = vmatprep.subr.mxu0 0.0
  %990 = vmatpush1.msra.mxu0 0.0
  %991 = vmatprep.subr.mxu0 0.0
  %992 = vmatpush1.msra.mxu0 0.0
  %993 = vmatprep.subr.mxu0 0.0
  %994 = vmatpush1.msra.mxu0 0.0
  %995 = vmatprep.subr.mxu0 0.0
  %996 = vmatpush1.msra.mxu0 0.0
  %997 = vmatprep.subr.mxu0 0.0
  %998 = vmatpush1.msra.mxu0 0.0
  %999 = vmatprep.subr.mxu0 0.0
  %1000 = vmatpush1.msra.mxu0 0.0
  %1001 = vmatprep.subr.mxu0 0.0
  %1002 = vmatpush1.msra.mxu0 0.0
  %1003 = vmatprep.subr.mxu0 0.0
  %1004 = vmatpush1.msra.mxu0 0.0
  %1005 = vmatprep.subr.mxu0 0.0
  %1006 = vmatpush1.msra.mxu0 %v845
  %1007 = vmatprep.subr.mxu0 0.0
  %1008 = vmatpush1.msra.mxu0 %v844
  %1009 = vmatprep.subr.mxu0 0.0
  %1010 = vmatpush2.msra.mxu0 0.0
  %1011 = vmatprep.subr.mxu0 0.0
  %1012 = vmatpush2.msra.mxu0 0.0
  %1013 = vmatprep.subr.mxu0 0.0
  %1014 = vmatpush2.msra.mxu0 0.0
  %1015 = vmatprep.subr.mxu0 0.0
  %1016 = vmatpush2.msra.mxu0 0.0
  %1017 = vmatprep.subr.mxu0 0.0
  %1018 = vmatpush2.msra.mxu0 0.0
  %1019 = vmatprep.subr.mxu0 0.0
  %1020 = vmatpush2.msra.mxu0 0.0
  %1021 = vmatprep.subr.mxu0 0.0
  %1022 = vmatpush2.msra.mxu0 0.0
  %1023 = vmatprep.subr.mxu0 0.0
  %1024 = vmatpush2.msra.mxu0 0.0
  %1025 = vmatprep.subr.mxu0 0.0
  %1026 = vmatpush2.msra.mxu0 0.0
  %1027 = vmatprep.subr.mxu0 0.0
  %1028 = vmatpush2.msra.mxu0 0.0
  %1029 = vmatprep.subr.mxu0 0.0
  %1030 = vmatpush2.msra.mxu0 0.0
  %1031 = vmatprep.subr.mxu0 0.0
  %1032 = vmatpush2.msra.mxu0 0.0
  %1033 = vmatprep.subr.mxu0 0.0
  %1034 = vmatpush2.msra.mxu0 0.0
  %1035 = vmatprep.subr.mxu0 0.0
  %1036 = vmatpush2.msra.mxu0 0.0
  %1037 = vmatprep.subr.mxu0 0.0
  %1038 = vmatpush2.msra.mxu0 0.0
  %1039 = vmatprep.subr.mxu0 0.0
  %1040 = vmatpush2.msra.mxu0 0.0
  %1041 = vmatprep.mubr.f32.mxu0 0.0
  %1042 = vmatmul.mubr.f32.gmra.mxu0 %v63
  %v1043 = vpop.f32.mrf.mxu0
  %v1044 = vadd.f32 0.0, %v1043
  %v1045 = vpop.f32.mrf.mxu0
  %1046 = vmatprep.mubr.f32.mxu0 0.0
  %1047 = vmatmul.mubr.f32.gmra.mxu0 %v66
  %v1048 = vpop.f32.mrf.mxu0
  %v1049 = vadd.f32 0.0, %v1048
  %v1050 = vpop.f32.mrf.mxu0
  %1051 = vdwg.mxu0
  %1052 = vmatprep.subr.mxu0 0.0
  %1053 = vmatpush1.msra.mxu0 0.0
  %1054 = vmatprep.subr.mxu0 0.0
  %1055 = vmatpush1.msra.mxu0 0.0
  %1056 = vmatprep.subr.mxu0 0.0
  %1057 = vmatpush1.msra.mxu0 0.0
  %1058 = vmatprep.subr.mxu0 0.0
  %1059 = vmatpush1.msra.mxu0 0.0
  %1060 = vmatprep.subr.mxu0 0.0
  %1061 = vmatpush1.msra.mxu0 0.0
  %1062 = vmatprep.subr.mxu0 0.0
  %1063 = vmatpush1.msra.mxu0 0.0
  %1064 = vmatprep.subr.mxu0 0.0
  %1065 = vmatpush1.msra.mxu0 0.0
  %1066 = vmatprep.subr.mxu0 0.0
  %1067 = vmatpush1.msra.mxu0 0.0
  %1068 = vmatprep.subr.mxu0 0.0
  %1069 = vmatpush1.msra.mxu0 0.0
  %1070 = vmatprep.subr.mxu0 0.0
  %1071 = vmatpush1.msra.mxu0 0.0
  %1072 = vmatprep.subr.mxu0 0.0
  %1073 = vmatpush1.msra.mxu0 0.0
  %1074 = vmatprep.subr.mxu0 0.0
  %1075 = vmatpush1.msra.mxu0 0.0
  %1076 = vmatprep.subr.mxu0 0.0
  %1077 = vmatpush1.msra.mxu0 0.0
  %1078 = vmatprep.subr.mxu0 0.0
  %1079 = vmatpush1.msra.mxu0 0.0
  %1080 = vmatprep.subr.mxu0 0.0
  %1081 = vmatpush1.msra.mxu0 %v847
  %1082 = vmatprep.subr.mxu0 0.0
  %1083 = vmatpush1.msra.mxu0 %v846
  %1084 = vmatprep.subr.mxu0 0.0
  %1085 = vmatpush2.msra.mxu0 0.0
  %1086 = vmatprep.subr.mxu0 0.0
  %1087 = vmatpush2.msra.mxu0 0.0
  %1088 = vmatprep.subr.mxu0 0.0
  %1089 = vmatpush2.msra.mxu0 0.0
  %1090 = vmatprep.subr.mxu0 0.0
  %1091 = vmatpush2.msra.mxu0 0.0
  %1092 = vmatprep.subr.mxu0 0.0
  %1093 = vmatpush2.msra.mxu0 0.0
  %1094 = vmatprep.subr.mxu0 0.0
  %1095 = vmatpush2.msra.mxu0 0.0
  %1096 = vmatprep.subr.mxu0 0.0
  %1097 = vmatpush2.msra.mxu0 0.0
  %1098 = vmatprep.subr.mxu0 0.0
  %1099 = vmatpush2.msra.mxu0 0.0
  %1100 = vmatprep.subr.mxu0 0.0
  %1101 = vmatpush2.msra.mxu0 0.0
  %1102 = vmatprep.subr.mxu0 0.0
  %1103 = vmatpush2.msra.mxu0 0.0
  %1104 = vmatprep.subr.mxu0 0.0
  %1105 = vmatpush2.msra.mxu0 0.0
  %1106 = vmatprep.subr.mxu0 0.0
  %1107 = vmatpush2.msra.mxu0 0.0
  %1108 = vmatprep.subr.mxu0 0.0
  %1109 = vmatpush2.msra.mxu0 0.0
  %1110 = vmatprep.subr.mxu0 0.0
  %1111 = vmatpush2.msra.mxu0 0.0
  %1112 = vmatprep.subr.mxu0 0.0
  %1113 = vmatpush2.msra.mxu0 0.0
  %1114 = vmatprep.subr.mxu0 0.0
  %1115 = vmatpush2.msra.mxu0 0.0
  %1116 = vmatprep.mubr.f32.mxu0 0.0
  %1117 = vmatmul.mubr.f32.gmra.mxu0 %v144
  %v1118 = vpop.f32.mrf.mxu0
  %v1119 = vadd.f32 0.0, %v1118
  %v1120 = vpop.f32.mrf.mxu0
  %1121 = vmatprep.mubr.f32.mxu0 0.0
  %1122 = vmatmul.mubr.f32.gmra.mxu0 %v147
  %v1123 = vpop.f32.mrf.mxu0
  %v1124 = vadd.f32 0.0, %v1123
  %v1125 = vpop.f32.mrf.mxu0
  %1126 = vdwg.mxu0
  %v1127 = vld [vmem:[%s7] sm:$0x1]
  %v1129 = vlaneseq
  %v1130 = vshrl.u32 %v1129, 7
  %v1131 = vsub.s32 0, %v1130
  %v1132 = vrot.slane %v1127, %v1131
  %1134 = vmatprep.subr.mxu0 0.0
  %1135 = vmatpush1.msra.mxu0 %v976
  %1136 = vmatprep.subr.mxu0 0.0
  %1137 = vmatpush1.msra.mxu0 %v975
  %1138 = vmatprep.subr.mxu0 0.0
  %1139 = vmatpush1.msra.mxu0 %v974
  %1140 = vmatprep.subr.mxu0 0.0
  %1141 = vmatpush1.msra.mxu0 %v973
  %1142 = vmatprep.subr.mxu0 0.0
  %1143 = vmatpush1.msra.mxu0 %v972
  %1144 = vmatprep.subr.mxu0 0.0
  %1145 = vmatpush1.msra.mxu0 %v971
  %1146 = vmatprep.subr.mxu0 0.0
  %1147 = vmatpush1.msra.mxu0 %v970
  %1148 = vmatprep.subr.mxu0 0.0
  %1149 = vmatpush1.msra.mxu0 %v969
  %1150 = vmatprep.subr.mxu0 0.0
  %1151 = vmatpush1.msra.mxu0 %v968
  %1152 = vmatprep.subr.mxu0 0.0
  %1153 = vmatpush1.msra.mxu0 %v967
  %1154 = vmatprep.subr.mxu0 0.0
  %1155 = vmatpush1.msra.mxu0 %v966
  %1156 = vmatprep.subr.mxu0 0.0
  %1157 = vmatpush1.msra.mxu0 %v965
  %1158 = vmatprep.subr.mxu0 0.0
  %1159 = vmatpush1.msra.mxu0 %v964
  %1160 = vmatprep.subr.mxu0 0.0
  %1161 = vmatpush1.msra.mxu0 %v963
  %1162 = vmatprep.subr.mxu0 0.0
  %1163 = vmatpush1.msra.mxu0 %v962
  %1164 = vmatprep.subr.mxu0 0.0
  %1165 = vmatpush1.msra.mxu0 %v961
  %1166 = vmatprep.subr.mxu0 0.0
  %1167 = vmatpush2.msra.mxu0 0.0
  %1168 = vmatprep.subr.mxu0 0.0
  %1169 = vmatpush2.msra.mxu0 0.0
  %1170 = vmatprep.subr.mxu0 0.0
  %1171 = vmatpush2.msra.mxu0 0.0
  %1172 = vmatprep.subr.mxu0 0.0
  %1173 = vmatpush2.msra.mxu0 0.0
  %1174 = vmatprep.subr.mxu0 0.0
  %1175 = vmatpush2.msra.mxu0 0.0
  %1176 = vmatprep.subr.mxu0 0.0
  %1177 = vmatpush2.msra.mxu0 0.0
  %1178 = vmatprep.subr.mxu0 0.0
  %1179 = vmatpush2.msra.mxu0 0.0
  %1180 = vmatprep.subr.mxu0 0.0
  %1181 = vmatpush2.msra.mxu0 0.0
  %1182 = vmatprep.subr.mxu0 0.0
  %1183 = vmatpush2.msra.mxu0 0.0
  %1184 = vmatprep.subr.mxu0 0.0
  %1185 = vmatpush2.msra.mxu0 0.0
  %1186 = vmatprep.subr.mxu0 0.0
  %1187 = vmatpush2.msra.mxu0 0.0
  %1188 = vmatprep.subr.mxu0 0.0
  %1189 = vmatpush2.msra.mxu0 0.0
  %1190 = vmatprep.subr.mxu0 0.0
  %1191 = vmatpush2.msra.mxu0 0.0
  %1192 = vmatprep.subr.mxu0 0.0
  %1193 = vmatpush2.msra.mxu0 0.0
  %1194 = vmatprep.subr.mxu0 0.0
  %1195 = vmatpush2.msra.mxu0 0.0
  %1196 = vmatprep.subr.mxu0 0.0
  %1197 = vmatpush2.msra.mxu0 0.0
  %1198 = vmatprep.mubr.f32.mxu0 0.0
  %1199 = vmatmul.mubr.f32.gmra.mxu0 %v1044
  %v1200 = vpop.f32.mrf.mxu0
  %v1201 = vadd.f32 %v1132, %v1200
  %v1202 = vpop.f32.mrf.mxu0
  %1203 = vmatprep.mubr.f32.mxu0 0.0
  %1204 = vmatmul.mubr.f32.gmra.mxu0 %v1049
  %v1205 = vpop.f32.mrf.mxu0
  %v1206 = vadd.f32 %v1132, %v1205
  %v1207 = vpop.f32.mrf.mxu0
  %1208 = vmatprep.mubr.f32.mxu0 0.0
  %1209 = vmatmul.mubr.f32.gmra.mxu0 %v1119
  %v1210 = vpop.f32.mrf.mxu0
  %v1211 = vadd.f32 %v1132, %v1210
  %v1212 = vpop.f32.mrf.mxu0
  %1213 = vmatprep.mubr.f32.mxu0 0.0
  %1214 = vmatmul.mubr.f32.gmra.mxu0 %v1124
  %v1215 = vpop.f32.mrf.mxu0
  %v1216 = vadd.f32 %v1132, %v1215
  %v1217 = vpop.f32.mrf.mxu0
  %1218 = vdwg.mxu0
  %v1219 = vmul.f32 %v1201, %v1201
  %v1220 = vmul.f32 %v1206, %v1206
  %v1221 = vmul.f32 %v1211, %v1211
  %v1222 = vmul.f32 %v1216, %v1216
  %1223 = vadd.xlane.f32.xlu0 %v1219
  %v1224 = vpop.xlane.xlu0 %1223
  %1225 = vadd.xlane.f32.xlu0 %v1220
  %v1226 = vpop.xlane.xlu0 %1225
  %1227 = vadd.xlane.f32.xlu0 %v1221
  %v1228 = vpop.xlane.xlu0 %1227
  %1229 = vadd.xlane.f32.xlu0 %v1222
  %v1230 = vpop.xlane.xlu0 %1229
  %v1231 = vmax.f32 %v1224, 1e-24
  %v1232 = vmax.f32 %v1226, 1e-24
  %v1233 = vmax.f32 %v1228, 1e-24
  %v1234 = vmax.f32 %v1230, 1e-24
  %v1235 = vrsqrt.pop %v1231
  %v1236 = vrsqrt.pop %v1232
  %v1237 = vrsqrt.pop %v1233
  %v1238 = vrsqrt.pop %v1234
  %v1239 = vmul.f32 %v1201, %v1235
  %v1240 = vmul.f32 %v1206, %v1236
  %v1241 = vmul.f32 %v1211, %v1237
  %v1242 = vmul.f32 %v1216, %v1238
  %v1243 = vld [vmem:[%s12] sm:$0xff]
  %v1244 = vld [vmem:[%s12 + $0x8] sm:$0xff]
  %v1245 = vld [vmem:[%s12 + $0x10] sm:$0xff]
  %v1246 = vld [vmem:[%s12 + $0x18] sm:$0xff]
  %v1247 = vld [vmem:[%s10] sm:$0xff]
  %v1248 = vld [vmem:[%s10 + $0x8] sm:$0xff]
  %v1249 = vld [vmem:[%s10 + $0x10] sm:$0xff]
  %v1250 = vld [vmem:[%s10 + $0x18] sm:$0xff]
  %v1251 = vld [vmem:[%s10 + $0x20] sm:$0xff]
  %v1252 = vld [vmem:[%s10 + $0x28] sm:$0xff]
  %v1253 = vld [vmem:[%s10 + $0x30] sm:$0xff]
  %v1254 = vld [vmem:[%s10 + $0x38] sm:$0xff]
  %v1255 = vld [vmem:[%s10 + $0x40] sm:$0xff]
  %v1256 = vld [vmem:[%s10 + $0x48] sm:$0xff]
  %v1257 = vld [vmem:[%s10 + $0x50] sm:$0xff]
  %v1258 = vld [vmem:[%s10 + $0x58] sm:$0xff]
  %v1259 = vld [vmem:[%s10 + $0x60] sm:$0xff]
  %v1260 = vld [vmem:[%s10 + $0x68] sm:$0xff]
  %v1261 = vld [vmem:[%s10 + $0x70] sm:$0xff]
  %v1262 = vld [vmem:[%s10 + $0x78] sm:$0xff]
  %1263 = vmatprep.subr.mxu0 0.0
  %1264 = vmatpush1.msra.mxu0 %v1262
  %1265 = vmatprep.subr.mxu0 0.0
  %1266 = vmatpush1.msra.mxu0 %v1261
  %1267 = vmatprep.subr.mxu0 0.0
  %1268 = vmatpush1.msra.mxu0 %v1260
  %1269 = vmatprep.subr.mxu0 0.0
  %1270 = vmatpush1.msra.mxu0 %v1259
  %1271 = vmatprep.subr.mxu0 0.0
  %1272 = vmatpush1.msra.mxu0 %v1258
  %1273 = vmatprep.subr.mxu0 0.0
  %1274 = vmatpush1.msra.mxu0 %v1257
  %1275 = vmatprep.subr.mxu0 0.0
  %1276 = vmatpush1.msra.mxu0 %v1256
  %1277 = vmatprep.subr.mxu0 0.0
  %1278 = vmatpush1.msra.mxu0 %v1255
  %1279 = vmatprep.subr.mxu0 0.0
  %1280 = vmatpush1.msra.mxu0 %v1254
  %1281 = vmatprep.subr.mxu0 0.0
  %1282 = vmatpush1.msra.mxu0 %v1253
  %1283 = vmatprep.subr.mxu0 0.0
  %1284 = vmatpush1.msra.mxu0 %v1252
  %1285 = vmatprep.subr.mxu0 0.0
  %1286 = vmatpush1.msra.mxu0 %v1251
  %1287 = vmatprep.subr.mxu0 0.0
  %1288 = vmatpush1.msra.mxu0 %v1250
  %1289 = vmatprep.subr.mxu0 0.0
  %1290 = vmatpush1.msra.mxu0 %v1249
  %1291 = vmatprep.subr.mxu0 0.0
  %1292 = vmatpush1.msra.mxu0 %v1248
  %1293 = vmatprep.subr.mxu0 0.0
  %1294 = vmatpush1.msra.mxu0 %v1247
  %1295 = vmatprep.subr.mxu0 0.0
  %1296 = vmatpush2.msra.mxu0 0.0
  %1297 = vmatprep.subr.mxu0 0.0
  %1298 = vmatpush2.msra.mxu0 0.0
  %1299 = vmatprep.subr.mxu0 0.0
  %1300 = vmatpush2.msra.mxu0 0.0
  %1301 = vmatprep.subr.mxu0 0.0
  %1302 = vmatpush2.msra.mxu0 0.0
  %1303 = vmatprep.subr.mxu0 0.0
  %1304 = vmatpush2.msra.mxu0 0.0
  %1305 = vmatprep.subr.mxu0 0.0
  %1306 = vmatpush2.msra.mxu0 0.0
  %1307 = vmatprep.subr.mxu0 0.0
  %1308 = vmatpush2.msra.mxu0 0.0
  %1309 = vmatprep.subr.mxu0 0.0
  %1310 = vmatpush2.msra.mxu0 0.0
  %1311 = vmatprep.subr.mxu0 0.0
  %1312 = vmatpush2.msra.mxu0 0.0
  %1313 = vmatprep.subr.mxu0 0.0
  %1314 = vmatpush2.msra.mxu0 0.0
  %1315 = vmatprep.subr.mxu0 0.0
  %1316 = vmatpush2.msra.mxu0 0.0
  %1317 = vmatprep.subr.mxu0 0.0
  %1318 = vmatpush2.msra.mxu0 0.0
  %1319 = vmatprep.subr.mxu0 0.0
  %1320 = vmatpush2.msra.mxu0 0.0
  %1321 = vmatprep.subr.mxu0 0.0
  %1322 = vmatpush2.msra.mxu0 0.0
  %1323 = vmatprep.subr.mxu0 0.0
  %1324 = vmatpush2.msra.mxu0 0.0
  %1325 = vmatprep.subr.mxu0 0.0
  %1326 = vmatpush2.msra.mxu0 0.0
  %1327 = vmatprep.mubr.f32.mxu0 0.0
  %1328 = vmatmul.mubr.f32.gmra.mxu0 %v1239
  %v1329 = vpop.f32.mrf.mxu0
  %v1330 = vadd.f32 0.0, %v1329
  %v1331 = vpop.f32.mrf.mxu0
  %1332 = vmatprep.mubr.f32.mxu0 0.0
  %1333 = vmatmul.mubr.f32.gmra.mxu0 %v1240
  %v1334 = vpop.f32.mrf.mxu0
  %v1335 = vadd.f32 0.0, %v1334
  %v1336 = vpop.f32.mrf.mxu0
  %1337 = vmatprep.mubr.f32.mxu0 0.0
  %1338 = vmatmul.mubr.f32.gmra.mxu0 %v1241
  %v1339 = vpop.f32.mrf.mxu0
  %v1340 = vadd.f32 0.0, %v1339
  %v1341 = vpop.f32.mrf.mxu0
  %1342 = vmatprep.mubr.f32.mxu0 0.0
  %1343 = vmatmul.mubr.f32.gmra.mxu0 %v1242
  %v1344 = vpop.f32.mrf.mxu0
  %v1345 = vadd.f32 0.0, %v1344
  %v1346 = vpop.f32.mrf.mxu0
  %1347 = vdwg.mxu0
  %v1348 = vadd.f32 %v1243, %v1330
  %v1349 = vadd.f32 %v1244, %v1335
  %v1350 = vadd.f32 %v1245, %v1340
  %v1351 = vadd.f32 %v1246, %v1345
  %1352 = vst [vmem:[%s12] sm:$0xff] %v1348
  %1353 = vst [vmem:[%s12 + $0x8] sm:$0xff] %v1349
  %1354 = vst [vmem:[%s12 + $0x10] sm:$0xff] %v1350
  %1355 = vst [vmem:[%s12 + $0x18] sm:$0xff] %v1351
  // Predicated region
  $region50: #{gcn_encoder_node_forward.1} parent=0 // pred_check
    _
  $region51: #{gcn_encoder_node_forward.1} parent=0 // pred_check_branch
    %1357 = sbr.rel (0) target = $region53
  $region52: #{gcn_encoder_node_forward.1} parent=0 // pred_region
    _
  $region53: #{gcn_encoder_node_forward.1} parent=0 // pred_fallthru
    _
  // Predicated region
  $region54: #{gcn_encoder_node_forward.1} parent=0 // pred_check
    _
  $region55: #{gcn_encoder_node_forward.1} parent=0 // pred_check_branch
    %1359 = sbr.rel (0) target = $region57
  $region56: #{gcn_encoder_node_forward.1} parent=0 // pred_region
    _
  $region57: #{gcn_encoder_node_forward.1} parent=0 // pred_fallthru
    _

</llo_original>
